<compile_context>
chip_gen: v7x
topology: tpu7x:2x2x1
jax: 0.10.0
libtpu: 0.0.40
codegen_flags: <defaults>
</compile_context>

<pallas_src>
import jax
import jax.numpy as jnp
import numpy as np
from jax.experimental import pallas as pl
from jax.experimental.pallas import tpu as pltpu

EPS = 1e-5


# ----------------------------- Pallas kernels ------------------------------ #

def stats_kernel(x_ref, sum_ref, sq_ref):
    """Tiled per-lane sum / sum-of-squares reduction over a lane-dense 2D array."""
    i = pl.program_id(0)

    @pl.when(i == 0)
    def _init():
        sum_ref[...] = jnp.zeros_like(sum_ref)
        sq_ref[...] = jnp.zeros_like(sq_ref)

    x = x_ref[...].astype(jnp.float32)
    sum_ref[...] += jnp.sum(x, axis=0, keepdims=True)
    sq_ref[...] += jnp.sum(x * x, axis=0, keepdims=True)


def fused_conv_kernel(xq_ref, scale_ref, shift_ref, wq_ref, bias_ref,
                      o_ref, ysum_ref, ysq_ref):
    # xq_ref:      (1, Hq, 2L)  row-pair padded raw activation for one image; L = (W+2)*Cin,
    #              Hq = (H+2)/2; lane layout of each half = (padded column, channel).
    # scale/shift: (1, 2L)      fused BN affine params, pad-column lanes pre-zeroed.
    # wq_ref:      (4L, 2*W*Cout) banded conv weights (row-pair formulation).
    # bias_ref:    (1, 2*W*Cout)
    # o_ref:       (1, H/2, 2*W*Cout)  two output rows per stored row -> 128-lane stores.
    # ysum/ysq:    (1, 1, 2*W*Cout)    per-lane stats of this image's output (BN stats cache).
    hq, l2 = xq_ref.shape[1], xq_ref.shape[2]
    l_half = l2 // 2
    h2 = hq - 1

    xq = xq_ref[0]
    # BN apply + ReLU (pad columns come out exactly 0 because scale/shift are zeroed there).
    xn = jnp.maximum(xq * scale_ref[...] + shift_ref[...], 0.0)
    # Zero the two conv pad rows: padded row 0 = first half of pair-row 0,
    # padded row H+1 = second half of pair-row Hq-1.
    row = jax.lax.broadcasted_iota(jnp.int32, (hq, l2), 0)
    lane = jax.lax.broadcasted_iota(jnp.int32, (hq, l2), 1)
    pad = ((row == 0) & (lane < l_half)) | ((row == hq - 1) & (lane >= l_half))
    xn = jnp.where(pad, 0.0, xn)

    # Single MXU dot: operand row p = padded rows [2p, 2p+1 | 2p+2, 2p+3] -> (H/2, 4L).
    a = jnp.concatenate([xn[0:h2, :], xn[1:h2 + 1, :]], axis=1)
    y = jnp.dot(a, wq_ref[...], preferred_element_type=jnp.float32) + bias_ref[...]

    o_ref[0] = y.astype(o_ref.dtype)
    ysum_ref[0] = jnp.sum(y, axis=0, keepdims=True)
    ysq_ref[0] = jnp.sum(y * y, axis=0, keepdims=True)


# ----------------------------- Pallas wrappers ----------------------------- #

def _round_up(a, b):
    return ((a + b - 1) // b) * b


def channel_stats_pallas(x2d):
    """Per-lane (sum, sumsq) over rows of a lane-dense 2D array (zero-padded cdiv row grid)."""
    r, lanes = x2d.shape
    tile = min(512, _round_up(r, 8))
    rp = _round_up(r, tile)
    if rp != r:  # zero rows do not change sum / sumsq
        x2d = jnp.pad(x2d, ((0, rp - r), (0, 0)))
    return pl.pallas_call(
        stats_kernel,
        out_shape=(jax.ShapeDtypeStruct((1, lanes), jnp.float32),
                   jax.ShapeDtypeStruct((1, lanes), jnp.float32)),
        grid=(rp // tile,),
        in_specs=[pl.BlockSpec((tile, lanes), lambda i: (i, 0))],
        out_specs=(pl.BlockSpec((1, lanes), lambda i: (0, 0)),
                   pl.BlockSpec((1, lanes), lambda i: (0, 0))),
        compiler_params=pltpu.CompilerParams(
            dimension_semantics=("arbitrary",),
            vmem_limit_bytes=32 * 1024 * 1024),
    )(x2d)


def input_channel_stats(x_nhwc):
    """Per-channel (sum, sumsq) of the raw input via one lane-dense Pallas reduction."""
    n, h, w, c = x_nhwc.shape
    rows, lanes, g = n * h * w, c, 1
    while lanes < 128 and rows % 2 == 0:   # group whole pixels into lanes until >= 128 lanes
        lanes *= 2
        rows //= 2
        g *= 2
    s, q = channel_stats_pallas(x_nhwc.reshape(rows, lanes))
    return s.reshape(g, c).sum(axis=0), q.reshape(g, c).sum(axis=0)


def fused_bn_relu_conv_pallas(xq, scale2, shift2, wq, bias2):
    n, hq, l2 = xq.shape
    h2 = hq - 1
    k = 2 * l2
    no = bias2.shape[-1]
    return pl.pallas_call(
        fused_conv_kernel,
        out_shape=(jax.ShapeDtypeStruct((n, h2, no), jnp.float32),
                   jax.ShapeDtypeStruct((n, 1, no), jnp.float32),
                   jax.ShapeDtypeStruct((n, 1, no), jnp.float32)),
        grid=(n,),
        in_specs=[
            pl.BlockSpec((1, hq, l2), lambda i: (i, 0, 0)),
            pl.BlockSpec((1, l2), lambda i: (0, 0)),
            pl.BlockSpec((1, l2), lambda i: (0, 0)),
            pl.BlockSpec((k, no), lambda i: (0, 0)),
            pl.BlockSpec((1, no), lambda i: (0, 0)),
        ],
        out_specs=(pl.BlockSpec((1, h2, no), lambda i: (i, 0, 0)),
                   pl.BlockSpec((1, 1, no), lambda i: (i, 0, 0)),
                   pl.BlockSpec((1, 1, no), lambda i: (i, 0, 0))),
        compiler_params=pltpu.CompilerParams(
            dimension_semantics=("parallel",),
            vmem_limit_bytes=64 * 1024 * 1024),
    )(xq, scale2, shift2, wq, bias2)


# ------------------------------ Layout glue -------------------------------- #

def build_pair_weights(weights, w_out):
    """HWIO (3,3,Cin,Cout) -> (4L, 2*W*Cout) banded matrix for the row-pair formulation.

    Input lanes: block b in [0,4) = padded row 2p+b, lane within block = wcol*Cin + ci.
    Output cols: parity*W*Cout + w*Cout + co (output rows 2p+parity).
    """
    kh, kw, cin, cout = weights.shape
    wp = w_out + kw - 1
    l_band = wp * cin
    lane = jnp.arange(l_band)
    wcol = lane // cin
    ci = lane % cin
    ocol = jnp.arange(w_out * cout)
    w_idx = ocol // cout
    co = ocol % cout
    dx = wcol[:, None] - w_idx[None, :]                       # (L, W*Cout)
    dx_valid = ((dx >= 0) & (dx < kw)).astype(weights.dtype)
    dxc = jnp.clip(dx, 0, kw - 1)
    blocks = []
    for b in range(4):
        halves = []
        for parity in range(2):
            dy = b - parity
            if 0 <= dy < kh:
                g = weights[dy, dxc, ci[:, None], co[None, :]] * dx_valid
            else:
                g = jnp.zeros((l_band, w_out * cout), weights.dtype)
            halves.append(g)
        blocks.append(jnp.concatenate(halves, axis=1))        # (L, 2*W*Cout)
    return jnp.concatenate(blocks, axis=0)                    # (4L, 2*W*Cout)


def expand_affine(scale_c, shift_c, w_out, cin):
    """Per-channel BN scale/shift -> per-lane (1, 2*(W+2)*Cin), pad-column lanes zeroed."""
    wp = w_out + 2
    colmask = ((jnp.arange(wp) >= 1) & (jnp.arange(wp) <= w_out)).astype(jnp.float32)
    s = (colmask[:, None] * scale_c[None, :]).reshape(1, wp * cin)
    t = (colmask[:, None] * shift_c[None, :]).reshape(1, wp * cin)
    return jnp.tile(s, (1, 2)), jnp.tile(t, (1, 2))


# ------------------------------- Module glue ------------------------------- #

@jax.jit
def dense_block_forward(x_nchw, params):
    x = jnp.transpose(x_nchw, (0, 2, 3, 1))            # NCHW -> NHWC
    n, h, w, c0 = x.shape
    assert h % 2 == 0, "row-pair conv layout requires even H"
    growth = params[0][3].shape[0]
    c_total = c0 + len(params) * growth
    m_total = float(n * h * w)
    hp, wp = h + 2, w + 2

    # Padded NHWC channel slab kept across layers: each layer writes only its Cout slice.
    buf = jnp.zeros((n, hp, wp, c_total), jnp.float32)
    buf = buf.at[:, 1:h + 1, 1:w + 1, :c0].set(x)

    # Per-channel (sum, sumsq) cache: the input is reduced once; each layer's output stats come
    # out of the fused conv kernel, so the growing activation is never re-read for BN statistics.
    s0, q0 = input_channel_stats(x)
    ch_sum = jnp.zeros((c_total,), jnp.float32).at[:c0].set(s0)
    ch_sq = jnp.zeros((c_total,), jnp.float32).at[:c0].set(q0)

    c = c0
    for gamma, beta, wgt, bias in params:
        # Assemble layer-i BN stats from the cached per-channel sums (training-mode, biased var).
        mean = ch_sum[:c] / m_total
        var = ch_sq[:c] / m_total - mean * mean
        scale_c = gamma.reshape(-1) * jax.lax.rsqrt(var + EPS)
        shift_c = beta.reshape(-1) - mean * scale_c

        scale2, shift2 = expand_affine(scale_c, shift_c, w, c)
        wq = build_pair_weights(wgt, w)
        bias2 = jnp.tile(bias.reshape(1, -1), (1, 2 * w))

        # Row-pair lane-dense layout: (N, (H+2)/2, 2*(W+2)*c).
        xq = buf[..., :c].reshape(n, hp // 2, 2 * wp * c)
        y, ysum, ysq = fused_bn_relu_conv_pallas(xq, scale2, shift2, wq, bias2)

        # Unpack (N, H/2, 2*W*Cout) -> (N, H, W, Cout) and write into the slab.
        y = y.reshape(n, h // 2, 2, w, growth).reshape(n, h, w, growth)
        buf = buf.at[:, 1:h + 1, 1:w + 1, c:c + growth].set(y)

        # Cache this layer's per-channel stats from the kernel's per-lane partials.
        s = jnp.sum(ysum, axis=(0, 1)).reshape(2 * w, growth).sum(axis=0)
        q = jnp.sum(ysq, axis=(0, 1)).reshape(2 * w, growth).sum(axis=0)
        ch_sum = ch_sum.at[c:c + growth].set(s)
        ch_sq = ch_sq.at[c:c + growth].set(q)
        c += growth

    out = buf[:, 1:h + 1, 1:w + 1, :]
    return jnp.transpose(out, (0, 3, 1, 2))             # back to NCHW


def init_params(key, num_convs, input_channels, num_channels):
    """Deterministic parameter init; shapes follow DenseBlock.__init__."""
    params = []
    for i in range(num_convs):
        cin = input_channels + i * num_channels
        key, kw, kb = jax.random.split(key, 3)
        bound = 1.0 / float(np.sqrt(cin * 9))
        w = jax.random.uniform(kw, (3, 3, cin, num_channels), jnp.float32, -bound, bound)
        b = jax.random.uniform(kb, (num_channels,), jnp.float32, -bound, bound)
        gamma = jnp.ones((1, cin), jnp.float32)   # BatchNorm2d default weight
        beta = jnp.zeros((1, cin), jnp.float32)   # BatchNorm2d default bias
        params.append((gamma, beta, w, b))
    return params


# ------------------------------ Pure-JAX ref -------------------------------- #

def reference_forward(x_nchw, params):
    x = jnp.transpose(x_nchw, (0, 2, 3, 1))
    for gamma, beta, w, b in params:
        mean = jnp.mean(x, axis=(0, 1, 2), keepdims=True)
        var = jnp.mean((x - mean) ** 2, axis=(0, 1, 2), keepdims=True)
        xn = (x - mean) * jax.lax.rsqrt(var + EPS)
        xn = xn * gamma.reshape(1, 1, 1, -1) + beta.reshape(1, 1, 1, -1)
        xn = jnp.maximum(xn, 0.0)
        y = jax.lax.conv_general_dilated(
            xn, w, window_strides=(1, 1), padding="SAME",
            dimension_numbers=("NHWC", "HWIO", "NHWC")) + b.reshape(1, 1, 1, -1)
        x = jnp.concatenate([x, y], axis=-1)
    return jnp.transpose(x, (0, 3, 1, 2))


# ---------------------------------- Main ------------------------------------ #

if __name__ == "__main__":
    key = jax.random.PRNGKey(0)
    k_x, k_p = jax.random.split(key)

    batch, channels, height, width = 2, 4, 16, 16
    num_convs, num_channels = 2, 4

    x = jax.random.normal(k_x, (batch, channels, height, width), jnp.float32)
    params = init_params(k_p, num_convs, channels, num_channels)

    out = dense_block_forward(x, params)
    out = jax.block_until_ready(out)

    expected_channels = channels + num_convs * num_channels
    assert out.shape == (batch, expected_channels, height, width), out.shape

    ref = jax.block_until_ready(reference_forward(x, params))
    np.testing.assert_allclose(np.asarray(out), np.asarray(ref), rtol=1e-4, atol=1e-4)

    print("KERNEL_OK")
</pallas_src>

<mosaic_0001>
module attributes {stable_mosaic.version = 11 : i64} {
  func.func @stats_kernel(%arg0: i32, %arg1: memref<16x128xf32, #tpu.memory_space<vmem>>, %arg2: memref<1x128xf32, #tpu.memory_space<vmem>>, %arg3: memref<1x128xf32, #tpu.memory_space<vmem>>) attributes {dimension_semantics = [#tpu.dimension_semantics<arbitrary>], iteration_bounds = array<i64: 1>, scalar_prefetch = 0 : i64, scratch_operands = 0 : i64, tpu.core_type = #tpu.core_type<tc>, window_params = [{transform_indices = @transform_0, window_bounds = array<i64: 16, 128>}, {pipeline_mode = #tpu.pipeline_mode<synchronous>, transform_indices = @transform_1, window_bounds = array<i64: 1, 128>}, {pipeline_mode = #tpu.pipeline_mode<synchronous>, transform_indices = @transform_2, window_bounds = array<i64: 1, 128>}]} {
    %c0_i32 = arith.constant 0 : i32
    %0 = arith.cmpi eq, %arg0, %c0_i32 : i32
    %1 = arith.extui %0 : i1 to i32
    %c0_i32_0 = arith.constant 0 : i32
    %2 = arith.cmpi ne, %1, %c0_i32_0 : i32
    scf.if %2 {
      %cst_11 = arith.constant 0.000000e+00 : f32
      %15 = vector.broadcast %cst_11 : f32 to vector<1x128xf32>
      %c0_12 = arith.constant 0 : index
      %c0_13 = arith.constant 0 : index
      %16 = vector.load %arg2[%c0_12, %c0_13] : memref<1x128xf32, #tpu.memory_space<vmem>>, vector<1x128xf32>
      tpu.vector_store %arg2[%c0_12, %c0_13], %15 {strides = array<i32>} : memref<1x128xf32, #tpu.memory_space<vmem>>, vector<1x128xf32>,
      %cst_14 = arith.constant 0.000000e+00 : f32
      %17 = vector.broadcast %cst_14 : f32 to vector<1x128xf32>
      %c0_15 = arith.constant 0 : index
      %c0_16 = arith.constant 0 : index
      %18 = vector.load %arg3[%c0_15, %c0_16] : memref<1x128xf32, #tpu.memory_space<vmem>>, vector<1x128xf32>
      tpu.vector_store %arg3[%c0_15, %c0_16], %17 {strides = array<i32>} : memref<1x128xf32, #tpu.memory_space<vmem>>, vector<1x128xf32>,
    } else {
    }
    %c0 = arith.constant 0 : index
    %c0_1 = arith.constant 0 : index
    %3 = vector.load %arg1[%c0, %c0_1] : memref<16x128xf32, #tpu.memory_space<vmem>>, vector<16x128xf32>
    %c0_2 = arith.constant 0 : index
    %c0_3 = arith.constant 0 : index
    %4 = vector.load %arg2[%c0_2, %c0_3] : memref<1x128xf32, #tpu.memory_space<vmem>>, vector<1x128xf32>
    %cst = arith.constant dense<0.000000e+00> : vector<128xf32>
    %5 = vector.multi_reduction <add>, %3, %cst [0] : vector<16x128xf32> to vector<128xf32>
    %6 = vector.shape_cast %5 : vector<128xf32> to vector<1x128xf32>
    %7 = arith.addf %4, %6 : vector<1x128xf32>
    %c0_4 = arith.constant 0 : index
    %c0_5 = arith.constant 0 : index
    %8 = vector.load %arg2[%c0_4, %c0_5] : memref<1x128xf32, #tpu.memory_space<vmem>>, vector<1x128xf32>
    tpu.vector_store %arg2[%c0_4, %c0_5], %7 {strides = array<i32>} : memref<1x128xf32, #tpu.memory_space<vmem>>, vector<1x128xf32>,
    %c0_6 = arith.constant 0 : index
    %c0_7 = arith.constant 0 : index
    %9 = vector.load %arg3[%c0_6, %c0_7] : memref<1x128xf32, #tpu.memory_space<vmem>>, vector<1x128xf32>
    %10 = arith.mulf %3, %3 : vector<16x128xf32>
    %cst_8 = arith.constant dense<0.000000e+00> : vector<128xf32>
    %11 = vector.multi_reduction <add>, %10, %cst_8 [0] : vector<16x128xf32> to vector<128xf32>
    %12 = vector.shape_cast %11 : vector<128xf32> to vector<1x128xf32>
    %13 = arith.addf %9, %12 : vector<1x128xf32>
    %c0_9 = arith.constant 0 : index
    %c0_10 = arith.constant 0 : index
    %14 = vector.load %arg3[%c0_9, %c0_10] : memref<1x128xf32, #tpu.memory_space<vmem>>, vector<1x128xf32>
    tpu.vector_store %arg3[%c0_9, %c0_10], %13 {strides = array<i32>} : memref<1x128xf32, #tpu.memory_space<vmem>>, vector<1x128xf32>,
    return
  }
  func.func @transform_0(%arg0: i32) -> (i32, i32) {
    %c0_i32 = arith.constant 0 : i32
    %c0_i32_0 = arith.constant 0 : i32
    return %arg0, %c0_i32 : i32, i32
  }
  func.func @transform_1(%arg0: i32) -> (i32, i32) {
    %c0_i32 = arith.constant 0 : i32
    %c0_i32_0 = arith.constant 0 : i32
    %c0_i32_1 = arith.constant 0 : i32
    return %c0_i32, %c0_i32_0 : i32, i32
  }
  func.func @transform_2(%arg0: i32) -> (i32, i32) {
    %c0_i32 = arith.constant 0 : i32
    %c0_i32_0 = arith.constant 0 : i32
    %c0_i32_1 = arith.constant 0 : i32
    return %c0_i32, %c0_i32_0 : i32, i32
  }
}

module attributes {stable_mosaic.version = 11 : i64} {
  func.func @fused_conv_kernel(%arg0: i32, %arg1: memref<1x9x144xf32, #tpu.memory_space<vmem>>, %arg2: memref<1x144xf32, #tpu.memory_space<vmem>>, %arg3: memref<1x144xf32, #tpu.memory_space<vmem>>, %arg4: memref<288x128xf32, #tpu.memory_space<vmem>>, %arg5: memref<1x128xf32, #tpu.memory_space<vmem>>, %arg6: memref<1x8x128xf32, #tpu.memory_space<vmem>>, %arg7: memref<1x1x128xf32, #tpu.memory_space<vmem>>, %arg8: memref<1x1x128xf32, #tpu.memory_space<vmem>>) attributes {dimension_semantics = [#tpu.dimension_semantics<parallel>], iteration_bounds = array<i64: 2>, scalar_prefetch = 0 : i64, scratch_operands = 0 : i64, tpu.core_type = #tpu.core_type<tc>, window_params = [{transform_indices = @transform_0, window_bounds = array<i64: 1, 9, 144>}, {pipeline_mode = #tpu.pipeline_mode<synchronous>, transform_indices = @transform_1, window_bounds = array<i64: 1, 144>}, {pipeline_mode = #tpu.pipeline_mode<synchronous>, transform_indices = @transform_2, window_bounds = array<i64: 1, 144>}, {pipeline_mode = #tpu.pipeline_mode<synchronous>, transform_indices = @transform_3, window_bounds = array<i64: 288, 128>}, {pipeline_mode = #tpu.pipeline_mode<synchronous>, transform_indices = @transform_4, window_bounds = array<i64: 1, 128>}, {transform_indices = @transform_5, window_bounds = array<i64: 1, 8, 128>}, {transform_indices = @transform_6, window_bounds = array<i64: 1, 1, 128>}, {transform_indices = @transform_7, window_bounds = array<i64: 1, 1, 128>}]} {
    %c0 = arith.constant 0 : index
    %c0_0 = arith.constant 0 : index
    %c0_1 = arith.constant 0 : index
    %0 = vector.load %arg1[%c0, %c0_0, %c0_1] : memref<1x9x144xf32, #tpu.memory_space<vmem>>, vector<1x9x144xf32>
    %1 = vector.shape_cast %0 : vector<1x9x144xf32> to vector<9x144xf32>
    %c0_2 = arith.constant 0 : index
    %c0_3 = arith.constant 0 : index
    %2 = vector.load %arg2[%c0_2, %c0_3] : memref<1x144xf32, #tpu.memory_space<vmem>>, vector<1x144xf32>
    %3 = vector.broadcast %2 : vector<1x144xf32> to vector<9x144xf32>
    %4 = arith.mulf %1, %3 : vector<9x144xf32>
    %c0_4 = arith.constant 0 : index
    %c0_5 = arith.constant 0 : index
    %5 = vector.load %arg3[%c0_4, %c0_5] : memref<1x144xf32, #tpu.memory_space<vmem>>, vector<1x144xf32>
    %6 = vector.broadcast %5 : vector<1x144xf32> to vector<9x144xf32>
    %7 = arith.addf %4, %6 : vector<9x144xf32>
    %cst = arith.constant 0.000000e+00 : f32
    %8 = vector.broadcast %cst : f32 to vector<9x144xf32>
    %9 = arith.maximumf %7, %8 : vector<9x144xf32>
    %10 = tpu.iota {dimensions = array<i32: 0>} : vector<9x144xi32>
    %11 = tpu.iota {dimensions = array<i32: 1>} : vector<9x144xi32>
    %c0_i32 = arith.constant 0 : i32
    %12 = vector.broadcast %c0_i32 : i32 to vector<9x144xi32>
    %13 = arith.cmpi eq, %10, %12 : vector<9x144xi32>
    %c72_i32 = arith.constant 72 : i32
    %14 = vector.broadcast %c72_i32 : i32 to vector<9x144xi32>
    %15 = arith.cmpi slt, %11, %14 : vector<9x144xi32>
    %16 = arith.andi %13, %15 : vector<9x144xi1>
    %c8_i32 = arith.constant 8 : i32
    %17 = vector.broadcast %c8_i32 : i32 to vector<9x144xi32>
    %18 = arith.cmpi eq, %10, %17 : vector<9x144xi32>
    %c72_i32_6 = arith.constant 72 : i32
    %19 = vector.broadcast %c72_i32_6 : i32 to vector<9x144xi32>
    %20 = arith.cmpi sge, %11, %19 : vector<9x144xi32>
    %21 = arith.andi %18, %20 : vector<9x144xi1>
    %22 = arith.ori %16, %21 : vector<9x144xi1>
    %cst_7 = arith.constant 0.000000e+00 : f32
    %23 = vector.broadcast %cst_7 : f32 to vector<9x144xf32>
    %24 = arith.select %22, %23, %9 : vector<9x144xi1>, vector<9x144xf32>
    %25 = vector.extract_strided_slice %24 {offsets = [0, 0], sizes = [8, 144], strides = [1, 1]} : vector<9x144xf32> to vector<8x144xf32>
    %26 = vector.extract_strided_slice %24 {offsets = [1, 0], sizes = [8, 144], strides = [1, 1]} : vector<9x144xf32> to vector<8x144xf32>
    %27 = tpu.concatenate %25, %26 in 1 : vector<8x144xf32>, vector<8x144xf32> -> vector<8x288xf32>
    %c0_8 = arith.constant 0 : index
    %c0_9 = arith.constant 0 : index
    %28 = vector.load %arg4[%c0_8, %c0_9] : memref<288x128xf32, #tpu.memory_space<vmem>>, vector<288x128xf32>
    %cst_10 = arith.constant dense<0.000000e+00> : vector<8x128xf32>
    %29 = tpu.matmul %27, %28, %cst_10 {dimension_numbers = #tpu.dot_dimension_numbers<[1], [0], [0], [1], [0, 0, 1, 1], [], []>} : vector<8x288xf32>, vector<288x128xf32>, vector<8x128xf32> -> vector<8x128xf32>
    %c0_11 = arith.constant 0 : index
    %c0_12 = arith.constant 0 : index
    %30 = vector.load %arg5[%c0_11, %c0_12] : memref<1x128xf32, #tpu.memory_space<vmem>>, vector<1x128xf32>
    %31 = vector.broadcast %30 : vector<1x128xf32> to vector<8x128xf32>
    %32 = arith.addf %29, %31 : vector<8x128xf32>
    %c0_13 = arith.constant 0 : index
    %c0_14 = arith.constant 0 : index
    %c0_15 = arith.constant 0 : index
    %33 = vector.load %arg6[%c0_13, %c0_14, %c0_15] : memref<1x8x128xf32, #tpu.memory_space<vmem>>, vector<1x8x128xf32>
    %34 = vector.shape_cast %33 : vector<1x8x128xf32> to vector<8x128xf32>
    %35 = vector.shape_cast %32 : vector<8x128xf32> to vector<1x8x128xf32>
    tpu.vector_store %arg6[%c0_13, %c0_14, %c0_15], %35 {strides = array<i32>} : memref<1x8x128xf32, #tpu.memory_space<vmem>>, vector<1x8x128xf32>,
    %cst_16 = arith.constant dense<0.000000e+00> : vector<128xf32>
    %36 = vector.multi_reduction <add>, %32, %cst_16 [0] : vector<8x128xf32> to vector<128xf32>
    %37 = vector.shape_cast %36 : vector<128xf32> to vector<1x128xf32>
    %c0_17 = arith.constant 0 : index
    %c0_18 = arith.constant 0 : index
    %c0_19 = arith.constant 0 : index
    %38 = vector.load %arg7[%c0_17, %c0_18, %c0_19] : memref<1x1x128xf32, #tpu.memory_space<vmem>>, vector<1x1x128xf32>
    %39 = vector.shape_cast %38 : vector<1x1x128xf32> to vector<1x128xf32>
    %40 = vector.shape_cast %37 : vector<1x128xf32> to vector<1x1x128xf32>
    tpu.vector_store %arg7[%c0_17, %c0_18, %c0_19], %40 {strides = array<i32>} : memref<1x1x128xf32, #tpu.memory_space<vmem>>, vector<1x1x128xf32>,
    %41 = arith.mulf %32, %32 : vector<8x128xf32>
    %cst_20 = arith.constant dense<0.000000e+00> : vector<128xf32>
    %42 = vector.multi_reduction <add>, %41, %cst_20 [0] : vector<8x128xf32> to vector<128xf32>
    %43 = vector.shape_cast %42 : vector<128xf32> to vector<1x128xf32>
    %c0_21 = arith.constant 0 : index
    %c0_22 = arith.constant 0 : index
    %c0_23 = arith.constant 0 : index
    %44 = vector.load %arg8[%c0_21, %c0_22, %c0_23] : memref<1x1x128xf32, #tpu.memory_space<vmem>>, vector<1x1x128xf32>
    %45 = vector.shape_cast %44 : vector<1x1x128xf32> to vector<1x128xf32>
    %46 = vector.shape_cast %43 : vector<1x128xf32> to vector<1x1x128xf32>
    tpu.vector_store %arg8[%c0_21, %c0_22, %c0_23], %46 {strides = array<i32>} : memref<1x1x128xf32, #tpu.memory_space<vmem>>, vector<1x1x128xf32>,
    return
  }
  func.func @transform_0(%arg0: i32) -> (i32, i32, i32) {
    %c0_i32 = arith.constant 0 : i32
    %c0_i32_0 = arith.constant 0 : i32
    %c0_i32_1 = arith.constant 0 : i32
    return %arg0, %c0_i32, %c0_i32_0 : i32, i32, i32
  }
  func.func @transform_1(%arg0: i32) -> (i32, i32) {
    %c0_i32 = arith.constant 0 : i32
    %c0_i32_0 = arith.constant 0 : i32
    %c0_i32_1 = arith.constant 0 : i32
    return %c0_i32, %c0_i32_0 : i32, i32
  }
  func.func @transform_2(%arg0: i32) -> (i32, i32) {
    %c0_i32 = arith.constant 0 : i32
    %c0_i32_0 = arith.constant 0 : i32
    %c0_i32_1 = arith.constant 0 : i32
    return %c0_i32, %c0_i32_0 : i32, i32
  }
  func.func @transform_3(%arg0: i32) -> (i32, i32) {
    %c0_i32 = arith.constant 0 : i32
    %c0_i32_0 = arith.constant 0 : i32
    %c0_i32_1 = arith.constant 0 : i32
    return %c0_i32, %c0_i32_0 : i32, i32
  }
  func.func @transform_4(%arg0: i32) -> (i32, i32) {
    %c0_i32 = arith.constant 0 : i32
    %c0_i32_0 = arith.constant 0 : i32
    %c0_i32_1 = arith.constant 0 : i32
    return %c0_i32, %c0_i32_0 : i32, i32
  }
  func.func @transform_5(%arg0: i32) -> (i32, i32, i32) {
    %c0_i32 = arith.constant 0 : i32
    %c0_i32_0 = arith.constant 0 : i32
    %c0_i32_1 = arith.constant 0 : i32
    return %arg0, %c0_i32, %c0_i32_0 : i32, i32, i32
  }
  func.func @transform_6(%arg0: i32) -> (i32, i32, i32) {
    %c0_i32 = arith.constant 0 : i32
    %c0_i32_0 = arith.constant 0 : i32
    %c0_i32_1 = arith.constant 0 : i32
    return %arg0, %c0_i32, %c0_i32_0 : i32, i32, i32
  }
  func.func @transform_7(%arg0: i32) -> (i32, i32, i32) {
    %c0_i32 = arith.constant 0 : i32
    %c0_i32_0 = arith.constant 0 : i32
    %c0_i32_1 = arith.constant 0 : i32
    return %arg0, %c0_i32, %c0_i32_0 : i32, i32, i32
  }
}

module attributes {stable_mosaic.version = 11 : i64} {
  func.func @fused_conv_kernel(%arg0: i32, %arg1: memref<1x9x288xf32, #tpu.memory_space<vmem>>, %arg2: memref<1x288xf32, #tpu.memory_space<vmem>>, %arg3: memref<1x288xf32, #tpu.memory_space<vmem>>, %arg4: memref<576x128xf32, #tpu.memory_space<vmem>>, %arg5: memref<1x128xf32, #tpu.memory_space<vmem>>, %arg6: memref<1x8x128xf32, #tpu.memory_space<vmem>>, %arg7: memref<1x1x128xf32, #tpu.memory_space<vmem>>, %arg8: memref<1x1x128xf32, #tpu.memory_space<vmem>>) attributes {dimension_semantics = [#tpu.dimension_semantics<parallel>], iteration_bounds = array<i64: 2>, scalar_prefetch = 0 : i64, scratch_operands = 0 : i64, tpu.core_type = #tpu.core_type<tc>, window_params = [{transform_indices = @transform_0, window_bounds = array<i64: 1, 9, 288>}, {pipeline_mode = #tpu.pipeline_mode<synchronous>, transform_indices = @transform_1, window_bounds = array<i64: 1, 288>}, {pipeline_mode = #tpu.pipeline_mode<synchronous>, transform_indices = @transform_2, window_bounds = array<i64: 1, 288>}, {pipeline_mode = #tpu.pipeline_mode<synchronous>, transform_indices = @transform_3, window_bounds = array<i64: 576, 128>}, {pipeline_mode = #tpu.pipeline_mode<synchronous>, transform_indices = @transform_4, window_bounds = array<i64: 1, 128>}, {transform_indices = @transform_5, window_bounds = array<i64: 1, 8, 128>}, {transform_indices = @transform_6, window_bounds = array<i64: 1, 1, 128>}, {transform_indices = @transform_7, window_bounds = array<i64: 1, 1, 128>}]} {
    %c0 = arith.constant 0 : index
    %c0_0 = arith.constant 0 : index
    %c0_1 = arith.constant 0 : index
    %0 = vector.load %arg1[%c0, %c0_0, %c0_1] : memref<1x9x288xf32, #tpu.memory_space<vmem>>, vector<1x9x288xf32>
    %1 = vector.shape_cast %0 : vector<1x9x288xf32> to vector<9x288xf32>
    %c0_2 = arith.constant 0 : index
    %c0_3 = arith.constant 0 : index
    %2 = vector.load %arg2[%c0_2, %c0_3] : memref<1x288xf32, #tpu.memory_space<vmem>>, vector<1x288xf32>
    %3 = vector.broadcast %2 : vector<1x288xf32> to vector<9x288xf32>
    %4 = arith.mulf %1, %3 : vector<9x288xf32>
    %c0_4 = arith.constant 0 : index
    %c0_5 = arith.constant 0 : index
    %5 = vector.load %arg3[%c0_4, %c0_5] : memref<1x288xf32, #tpu.memory_space<vmem>>, vector<1x288xf32>
    %6 = vector.broadcast %5 : vector<1x288xf32> to vector<9x288xf32>
    %7 = arith.addf %4, %6 : vector<9x288xf32>
    %cst = arith.constant 0.000000e+00 : f32
    %8 = vector.broadcast %cst : f32 to vector<9x288xf32>
    %9 = arith.maximumf %7, %8 : vector<9x288xf32>
    %10 = tpu.iota {dimensions = array<i32: 0>} : vector<9x288xi32>
    %11 = tpu.iota {dimensions = array<i32: 1>} : vector<9x288xi32>
    %c0_i32 = arith.constant 0 : i32
    %12 = vector.broadcast %c0_i32 : i32 to vector<9x288xi32>
    %13 = arith.cmpi eq, %10, %12 : vector<9x288xi32>
    %c144_i32 = arith.constant 144 : i32
    %14 = vector.broadcast %c144_i32 : i32 to vector<9x288xi32>
    %15 = arith.cmpi slt, %11, %14 : vector<9x288xi32>
    %16 = arith.andi %13, %15 : vector<9x288xi1>
    %c8_i32 = arith.constant 8 : i32
    %17 = vector.broadcast %c8_i32 : i32 to vector<9x288xi32>
    %18 = arith.cmpi eq, %10, %17 : vector<9x288xi32>
    %c144_i32_6 = arith.constant 144 : i32
    %19 = vector.broadcast %c144_i32_6 : i32 to vector<9x288xi32>
    %20 = arith.cmpi sge, %11, %19 : vector<9x288xi32>
    %21 = arith.andi %18, %20 : vector<9x288xi1>
    %22 = arith.ori %16, %21 : vector<9x288xi1>
    %cst_7 = arith.constant 0.000000e+00 : f32
    %23 = vector.broadcast %cst_7 : f32 to vector<9x288xf32>
    %24 = arith.select %22, %23, %9 : vector<9x288xi1>, vector<9x288xf32>
    %25 = vector.extract_strided_slice %24 {offsets = [0, 0], sizes = [8, 288], strides = [1, 1]} : vector<9x288xf32> to vector<8x288xf32>
    %26 = vector.extract_strided_slice %24 {offsets = [1, 0], sizes = [8, 288], strides = [1, 1]} : vector<9x288xf32> to vector<8x288xf32>
    %27 = tpu.concatenate %25, %26 in 1 : vector<8x288xf32>, vector<8x288xf32> -> vector<8x576xf32>
    %c0_8 = arith.constant 0 : index
    %c0_9 = arith.constant 0 : index
    %28 = vector.load %arg4[%c0_8, %c0_9] : memref<576x128xf32, #tpu.memory_space<vmem>>, vector<576x128xf32>
    %cst_10 = arith.constant dense<0.000000e+00> : vector<8x128xf32>
    %29 = tpu.matmul %27, %28, %cst_10 {dimension_numbers = #tpu.dot_dimension_numbers<[1], [0], [0], [1], [0, 0, 1, 1], [], []>} : vector<8x576xf32>, vector<576x128xf32>, vector<8x128xf32> -> vector<8x128xf32>
    %c0_11 = arith.constant 0 : index
    %c0_12 = arith.constant 0 : index
    %30 = vector.load %arg5[%c0_11, %c0_12] : memref<1x128xf32, #tpu.memory_space<vmem>>, vector<1x128xf32>
    %31 = vector.broadcast %30 : vector<1x128xf32> to vector<8x128xf32>
    %32 = arith.addf %29, %31 : vector<8x128xf32>
    %c0_13 = arith.constant 0 : index
    %c0_14 = arith.constant 0 : index
    %c0_15 = arith.constant 0 : index
    %33 = vector.load %arg6[%c0_13, %c0_14, %c0_15] : memref<1x8x128xf32, #tpu.memory_space<vmem>>, vector<1x8x128xf32>
    %34 = vector.shape_cast %33 : vector<1x8x128xf32> to vector<8x128xf32>
    %35 = vector.shape_cast %32 : vector<8x128xf32> to vector<1x8x128xf32>
    tpu.vector_store %arg6[%c0_13, %c0_14, %c0_15], %35 {strides = array<i32>} : memref<1x8x128xf32, #tpu.memory_space<vmem>>, vector<1x8x128xf32>,
    %cst_16 = arith.constant dense<0.000000e+00> : vector<128xf32>
    %36 = vector.multi_reduction <add>, %32, %cst_16 [0] : vector<8x128xf32> to vector<128xf32>
    %37 = vector.shape_cast %36 : vector<128xf32> to vector<1x128xf32>
    %c0_17 = arith.constant 0 : index
    %c0_18 = arith.constant 0 : index
    %c0_19 = arith.constant 0 : index
    %38 = vector.load %arg7[%c0_17, %c0_18, %c0_19] : memref<1x1x128xf32, #tpu.memory_space<vmem>>, vector<1x1x128xf32>
    %39 = vector.shape_cast %38 : vector<1x1x128xf32> to vector<1x128xf32>
    %40 = vector.shape_cast %37 : vector<1x128xf32> to vector<1x1x128xf32>
    tpu.vector_store %arg7[%c0_17, %c0_18, %c0_19], %40 {strides = array<i32>} : memref<1x1x128xf32, #tpu.memory_space<vmem>>, vector<1x1x128xf32>,
    %41 = arith.mulf %32, %32 : vector<8x128xf32>
    %cst_20 = arith.constant dense<0.000000e+00> : vector<128xf32>
    %42 = vector.multi_reduction <add>, %41, %cst_20 [0] : vector<8x128xf32> to vector<128xf32>
    %43 = vector.shape_cast %42 : vector<128xf32> to vector<1x128xf32>
    %c0_21 = arith.constant 0 : index
    %c0_22 = arith.constant 0 : index
    %c0_23 = arith.constant 0 : index
    %44 = vector.load %arg8[%c0_21, %c0_22, %c0_23] : memref<1x1x128xf32, #tpu.memory_space<vmem>>, vector<1x1x128xf32>
    %45 = vector.shape_cast %44 : vector<1x1x128xf32> to vector<1x128xf32>
    %46 = vector.shape_cast %43 : vector<1x128xf32> to vector<1x1x128xf32>
    tpu.vector_store %arg8[%c0_21, %c0_22, %c0_23], %46 {strides = array<i32>} : memref<1x1x128xf32, #tpu.memory_space<vmem>>, vector<1x1x128xf32>,
    return
  }
  func.func @transform_0(%arg0: i32) -> (i32, i32, i32) {
    %c0_i32 = arith.constant 0 : i32
    %c0_i32_0 = arith.constant 0 : i32
    %c0_i32_1 = arith.constant 0 : i32
    return %arg0, %c0_i32, %c0_i32_0 : i32, i32, i32
  }
  func.func @transform_1(%arg0: i32) -> (i32, i32) {
    %c0_i32 = arith.constant 0 : i32
    %c0_i32_0 = arith.constant 0 : i32
    %c0_i32_1 = arith.constant 0 : i32
    return %c0_i32, %c0_i32_0 : i32, i32
  }
  func.func @transform_2(%arg0: i32) -> (i32, i32) {
    %c0_i32 = arith.constant 0 : i32
    %c0_i32_0 = arith.constant 0 : i32
    %c0_i32_1 = arith.constant 0 : i32
    return %c0_i32, %c0_i32_0 : i32, i32
  }
  func.func @transform_3(%arg0: i32) -> (i32, i32) {
    %c0_i32 = arith.constant 0 : i32
    %c0_i32_0 = arith.constant 0 : i32
    %c0_i32_1 = arith.constant 0 : i32
    return %c0_i32, %c0_i32_0 : i32, i32
  }
  func.func @transform_4(%arg0: i32) -> (i32, i32) {
    %c0_i32 = arith.constant 0 : i32
    %c0_i32_0 = arith.constant 0 : i32
    %c0_i32_1 = arith.constant 0 : i32
    return %c0_i32, %c0_i32_0 : i32, i32
  }
  func.func @transform_5(%arg0: i32) -> (i32, i32, i32) {
    %c0_i32 = arith.constant 0 : i32
    %c0_i32_0 = arith.constant 0 : i32
    %c0_i32_1 = arith.constant 0 : i32
    return %arg0, %c0_i32, %c0_i32_0 : i32, i32, i32
  }
  func.func @transform_6(%arg0: i32) -> (i32, i32, i32) {
    %c0_i32 = arith.constant 0 : i32
    %c0_i32_0 = arith.constant 0 : i32
    %c0_i32_1 = arith.constant 0 : i32
    return %arg0, %c0_i32, %c0_i32_0 : i32, i32, i32
  }
  func.func @transform_7(%arg0: i32) -> (i32, i32, i32) {
    %c0_i32 = arith.constant 0 : i32
    %c0_i32_0 = arith.constant 0 : i32
    %c0_i32_1 = arith.constant 0 : i32
    return %arg0, %c0_i32, %c0_i32_0 : i32, i32, i32
  }
}

</mosaic_0001>

<llo_original>
// kernel: dense_block_forward.3
$region0: #{dense_block_forward.3}
  #allocation0 [shape = 'u32[]', space=smem, size = 0x4, offset = 0x4, fixed_abs, tag = 'smem constant byte address 0x4 - core index']
  #allocation1 [shape = 'u32[144,128]{1,0:T(1,128)}', space=vmem, size = 0x12000, scoped, tag = 'internal scratch']
  %s0 = inlined_call_operand.vmem [shape: f32[16,128], index: 0, kind: input, shape index: {}]
  %s1 = inlined_call_operand.vmem [shape: f32[1,128], index: 1, kind: output, shape index: {0}]
  %s2 = inlined_call_operand.vmem [shape: f32[1,128], index: 2, kind: output, shape index: {1}]
  %3 = xla_tuple %s1, %s2
  %s4 = sld [smem:[#allocation0]]
  $region26: #{dense_block_forward.3} parent=0
    _
  %s6 = ssub.s32 1, %s4
  %s7 = scalar_select 0, %s6, %s4
  // Predicated region
  $region2: #{dense_block_forward.3} parent=0 // pred_check
    _
  $region3: #{dense_block_forward.3} parent=0 // pred_check_branch
    %9 = sbr.rel (0) target = $region5
  $region4: #{dense_block_forward.3} parent=0 // pred_region
    _
  $region5: #{dense_block_forward.3} parent=0 // pred_fallthru
    _
  %p10 = scmp.eq.s32.totalorder 0, 0
  // Predicated region
  $region6: #{dense_block_forward.3} parent=0 // pred_check
    %p11 = pneg %p10
  $region7: #{dense_block_forward.3} parent=0 // pred_check_branch
    %13 = sbr.rel (%p11) target = $region9
  $region8: #{dense_block_forward.3} parent=0 // pred_region
    %14 = vst [vmem:[%s1] sm:$0x1] 0.0
    %15 = vst [vmem:[%s2] sm:$0x1] 0.0
  $region9: #{dense_block_forward.3} parent=0 // pred_fallthru
    _
  %v16 = vld [vmem:[%s0] sm:$0xff]
  %v17 = vld [vmem:[%s0 + $0x8] sm:$0xff]
  %v18 = vld [vmem:[%s1] sm:$0x1]
  %v19 = vadd.f32 %v16, %v17
  %v20 = vrot.slane %v19, 4
  %v21 = vadd.f32 %v19, %v20
  %v22 = vrot.slane %v21, 2
  %v23 = vadd.f32 %v21, %v22
  %v24 = vrot.slane %v23, 1
  %v25 = vadd.f32 %v23, %v24
  %v26 = vadd.f32 %v18, %v25
  %27 = vst [vmem:[%s1] sm:$0x1] %v26
  %v28 = vld [vmem:[%s2] sm:$0x1]
  %v29 = vmul.f32 %v16, %v16
  %v30 = vmul.f32 %v17, %v17
  %v31 = vadd.f32 %v29, %v30
  %v32 = vrot.slane %v31, 4
  %v33 = vadd.f32 %v31, %v32
  %v34 = vrot.slane %v33, 2
  %v35 = vadd.f32 %v33, %v34
  %v36 = vrot.slane %v35, 1
  %v37 = vadd.f32 %v35, %v36
  %v38 = vadd.f32 %v28, %v37
  %39 = vst [vmem:[%s2] sm:$0x1] %v38
  // Predicated region
  $region10: #{dense_block_forward.3} parent=0 // pred_check
    _
  $region11: #{dense_block_forward.3} parent=0 // pred_check_branch
    %41 = sbr.rel (0) target = $region13
  $region12: #{dense_block_forward.3} parent=0 // pred_region
    _
  $region13: #{dense_block_forward.3} parent=0 // pred_fallthru
    _
  // Predicated region
  $region14: #{dense_block_forward.3} parent=0 // pred_check
    _
  $region15: #{dense_block_forward.3} parent=0 // pred_check_branch
    %43 = sbr.rel (0) target = $region17
  $region16: #{dense_block_forward.3} parent=0 // pred_region
    _
  $region17: #{dense_block_forward.3} parent=0 // pred_fallthru
    _
  // Predicated region
  $region18: #{dense_block_forward.3} parent=0 // pred_check
    _
  $region19: #{dense_block_forward.3} parent=0 // pred_check_branch
    %45 = sbr.rel (0) target = $region21
  $region20: #{dense_block_forward.3} parent=0 // pred_region
    _
  $region21: #{dense_block_forward.3} parent=0 // pred_fallthru
    _
  // Predicated region
  $region22: #{dense_block_forward.3} parent=0 // pred_check
    _
  $region23: #{dense_block_forward.3} parent=0 // pred_check_branch
    %47 = sbr.rel (0) target = $region25
  $region24: #{dense_block_forward.3} parent=0 // pred_region
    _
  $region25: #{dense_block_forward.3} parent=0 // pred_fallthru
    _

// kernel: dense_block_forward.4
$region0: #{dense_block_forward.4}
  #allocation0 [shape = 'u32[]', space=smem, size = 0x4, offset = 0x4, fixed_abs, tag = 'smem constant byte address 0x4 - core index']
  #allocation1 [shape = 'u32[144,128]{1,0:T(1,128)}', space=vmem, size = 0x12000, scoped, tag = 'internal scratch']
  %s0 = inlined_call_operand.hbm [shape: f32[2,9,144], index: 0, kind: input, shape index: {}]
  %s1 = inlined_call_operand.hbm [shape: f32[1,144], index: 1, kind: input, shape index: {}]
  %s2 = inlined_call_operand.hbm [shape: f32[1,144], index: 2, kind: input, shape index: {}]
  %s3 = inlined_call_operand.hbm [shape: f32[288,128], index: 3, kind: input, shape index: {}]
  %s4 = inlined_call_operand.hbm [shape: f32[1,128], index: 4, kind: input, shape index: {}]
  %s5 = inlined_call_operand.hbm [shape: f32[2,8,128], index: 5, kind: output, shape index: {0}]
  %s6 = inlined_call_operand.hbm [shape: f32[2,1,128], index: 6, kind: output, shape index: {1}]
  %s7 = inlined_call_operand.hbm [shape: f32[2,1,128], index: 7, kind: output, shape index: {2}]
  %8 = xla_tuple %s5, %s6, %s7
  %s9 = sld [smem:[#allocation0]]
  $region89: #{dense_block_forward.4} parent=0
    _
  %s11 = ssub.s32 1, %s9
  %s12 = scalar_select 0, %s11, %s9
  $region1: #{dense_block_forward.4} parent=0
    #allocation2 [shape = 'u8[32768]{0}', space=vmem, size = 0x8000, scoped, tag = 'input window, operand 0']
    #allocation3 [shape = 's32[2]{0}', space=sflag, size = 0x8, scoped, tag = 'scoped memory for dense_block_forward.4']
    #allocation4 [shape = 's32[2]{0}', space=sflag, size = 0x8, scoped, tag = 'scoped memory for dense_block_forward.4']
    #allocation5 [shape = 'u8[1024]{0}', space=vmem, size = 0x400, scoped, tag = 'input window, operand 1, single buffered']
    #allocation6 [shape = 's32[1]{0}', space=sflag, size = 0x4, scoped, tag = 'scoped memory for dense_block_forward.4']
    #allocation7 [shape = 'u8[1024]{0}', space=vmem, size = 0x400, scoped, tag = 'input window, operand 2, single buffered']
    #allocation8 [shape = 'u8[147456]{0}', space=vmem, size = 0x24000, scoped, tag = 'input window, operand 3, single buffered']
    #allocation9 [shape = 's32[1]{0}', space=sflag, size = 0x4, scoped, tag = 'scoped memory for dense_block_forward.4']
    #allocation10 [shape = 'u8[512]{0}', space=vmem, size = 0x400, scoped, tag = 'input window, operand 4, single buffered']
    #allocation11 [shape = 'u8[8192]{0}', space=vmem, size = 0x2000, scoped, tag = 'output window, operand 0']
    #allocation12 [shape = 'u8[1024]{0}', space=vmem, size = 0x400, scoped, tag = 'output window, operand 1']
    #allocation13 [shape = 's32[2]{0}', space=sflag, size = 0x8, scoped, tag = 'scoped memory for dense_block_forward.4']
    #allocation14 [shape = 'u8[1024]{0}', space=vmem, size = 0x400, scoped, tag = 'output window, operand 2']
    %13 = vsyncpa [#allocation3], 0
    %s14 = scalar_lea.sflag [#allocation3], 1
    %15 = vsyncpa %s14, 0
    %16 = vsyncpa [#allocation6], 0
    %17 = vsyncpa [#allocation9], 0
    %18 = vsyncpa [#allocation4], 0
    %s19 = scalar_lea.sflag [#allocation4], 1
    %20 = vsyncpa %s19, 0
    %21 = vsyncpa [#allocation13], 0
    %s22 = scalar_lea.sflag [#allocation13], 1
    %23 = vsyncpa %s22, 0
    loop: start=0, step=1, limit=4
    $region2: #{dense_block_forward.4} parent=1 // loop_pre_header
      _
    $region3: #{dense_block_forward.4} parent=1 // loop_header
      %s25 = sphi 0, %s29
      %p26 = scmp.ge.s32.totalorder %s25, 4
      %s35 = sphi 0, %s37
      %s38 = sphi 0, %s35
      %s39 = sphi 0, %s38
      %s55 = sphi 0, %s39
      %s59 = sphi 0, %s59
      %s61 = sphi 0, %s59
      %s62 = sphi 0, %s61
      %s76 = sphi 0, %s62
      %s80 = sphi 0, %s80
      %s82 = sphi 0, %s80
      %s83 = sphi 0, %s82
      %s97 = sphi 0, %s83
      %s101 = sphi 0, %s101
      %s103 = sphi 0, %s101
      %s104 = sphi 0, %s103
      %s118 = sphi 0, %s104
      %s122 = sphi 0, %s122
      %s124 = sphi 0, %s122
      %s125 = sphi 0, %s124
      %s139 = sphi 0, %s125
      %s145 = sphi 0, %s147
      %s148 = sphi 0, %s145
      %s149 = sphi 0, %s148
      %s165 = sphi 0, %s149
      %s171 = sphi 0, %s173
      %s174 = sphi 0, %s171
      %s175 = sphi 0, %s174
      %s191 = sphi 0, %s175
      %s197 = sphi 0, %s199
      %s200 = sphi 0, %s197
      %s201 = sphi 0, %s200
      %s217 = sphi 0, %s201
    $region4: #{dense_block_forward.4} parent=1 // loop_header_branch
      %28 = sbr.rel (%p26) target = $region8
    $region5: #{dense_block_forward.4} parent=1 // loop_body
      %s30 = ssub.s32 %s25, 1
      %s31 = ssub.s32 %s25, 2
      %s32 = sadd.s32 %s25, 1
      %s33 = ssub.s32 %s25, %s32
      %p34 = scmp.eq.s32.totalorder %s33, 0
      %s36 = sadd.s32 %s35, 1
      %s37 = scalar_select %p34, %s35, %s36
      %p40 = pneg %p34
      %p41 = scmp.eq.s32.totalorder %s25, 1
      %p42 = por %p40, %p41
      %p43 = scmp.ne.s32.totalorder %s35, %s38
      %p44 = scmp.eq.s32.totalorder %s25, 0
      %p45 = por %p43, %p44
      %p46 = scmp.ne.s32.totalorder %s35, %s38
      %p47 = scmp.eq.s32.totalorder %s30, 1
      %p48 = por %p46, %p47
      %p49 = scmp.ne.s32.totalorder %s38, %s39
      %p50 = scmp.eq.s32.totalorder %s30, 0
      %p51 = por %p49, %p50
      %p52 = scmp.ne.s32.totalorder %s38, %s39
      %p53 = scmp.eq.s32.totalorder %s31, 1
      %p54 = por %p52, %p53
      %p56 = scmp.ne.s32.totalorder %s39, %s55
      %p57 = scmp.eq.s32.totalorder %s31, 0
      %p58 = por %p56, %p57
      %s60 = sadd.s32 %s59, 1
      %p63 = scmp.eq.s32.totalorder %s25, 1
      %p64 = scmp.ne.s32.totalorder %s59, %s61
      %p65 = scmp.eq.s32.totalorder %s25, 0
      %p66 = por %p64, %p65
      %p67 = scmp.ne.s32.totalorder %s59, %s61
      %p68 = scmp.eq.s32.totalorder %s30, 1
      %p69 = por %p67, %p68
      %p70 = scmp.ne.s32.totalorder %s61, %s62
      %p71 = scmp.eq.s32.totalorder %s30, 0
      %p72 = por %p70, %p71
      %p73 = scmp.ne.s32.totalorder %s61, %s62
      %p74 = scmp.eq.s32.totalorder %s31, 1
      %p75 = por %p73, %p74
      %p77 = scmp.ne.s32.totalorder %s62, %s76
      %p78 = scmp.eq.s32.totalorder %s31, 0
      %p79 = por %p77, %p78
      %s81 = sadd.s32 %s80, 1
      %p84 = scmp.eq.s32.totalorder %s25, 1
      %p85 = scmp.ne.s32.totalorder %s80, %s82
      %p86 = scmp.eq.s32.totalorder %s25, 0
      %p87 = por %p85, %p86
      %p88 = scmp.ne.s32.totalorder %s80, %s82
      %p89 = scmp.eq.s32.totalorder %s30, 1
      %p90 = por %p88, %p89
      %p91 = scmp.ne.s32.totalorder %s82, %s83
      %p92 = scmp.eq.s32.totalorder %s30, 0
      %p93 = por %p91, %p92
      %p94 = scmp.ne.s32.totalorder %s82, %s83
      %p95 = scmp.eq.s32.totalorder %s31, 1
      %p96 = por %p94, %p95
      %p98 = scmp.ne.s32.totalorder %s83, %s97
      %p99 = scmp.eq.s32.totalorder %s31, 0
      %p100 = por %p98, %p99
      %s102 = sadd.s32 %s101, 1
      %p105 = scmp.eq.s32.totalorder %s25, 1
      %p106 = scmp.ne.s32.totalorder %s101, %s103
      %p107 = scmp.eq.s32.totalorder %s25, 0
      %p108 = por %p106, %p107
      %p109 = scmp.ne.s32.totalorder %s101, %s103
      %p110 = scmp.eq.s32.totalorder %s30, 1
      %p111 = por %p109, %p110
      %p112 = scmp.ne.s32.totalorder %s103, %s104
      %p113 = scmp.eq.s32.totalorder %s30, 0
      %p114 = por %p112, %p113
      %p115 = scmp.ne.s32.totalorder %s103, %s104
      %p116 = scmp.eq.s32.totalorder %s31, 1
      %p117 = por %p115, %p116
      %p119 = scmp.ne.s32.totalorder %s104, %s118
      %p120 = scmp.eq.s32.totalorder %s31, 0
      %p121 = por %p119, %p120
      %s123 = sadd.s32 %s122, 1
      %p126 = scmp.eq.s32.totalorder %s25, 1
      %p127 = scmp.ne.s32.totalorder %s122, %s124
      %p128 = scmp.eq.s32.totalorder %s25, 0
      %p129 = por %p127, %p128
      %p130 = scmp.ne.s32.totalorder %s122, %s124
      %p131 = scmp.eq.s32.totalorder %s30, 1
      %p132 = por %p130, %p131
      %p133 = scmp.ne.s32.totalorder %s124, %s125
      %p134 = scmp.eq.s32.totalorder %s30, 0
      %p135 = por %p133, %p134
      %p136 = scmp.ne.s32.totalorder %s124, %s125
      %p137 = scmp.eq.s32.totalorder %s31, 1
      %p138 = por %p136, %p137
      %p140 = scmp.ne.s32.totalorder %s125, %s139
      %p141 = scmp.eq.s32.totalorder %s31, 0
      %p142 = por %p140, %p141
      %s143 = ssub.s32 %s25, %s32
      %p144 = scmp.eq.s32.totalorder %s143, 0
      %s146 = sadd.s32 %s145, 1
      %s147 = scalar_select %p144, %s145, %s146
      %p150 = pneg %p144
      %p151 = scmp.eq.s32.totalorder %s25, 1
      %p152 = por %p150, %p151
      %p153 = scmp.ne.s32.totalorder %s145, %s148
      %p154 = scmp.eq.s32.totalorder %s25, 0
      %p155 = por %p153, %p154
      %p156 = scmp.ne.s32.totalorder %s145, %s148
      %p157 = scmp.eq.s32.totalorder %s30, 1
      %p158 = por %p156, %p157
      %p159 = scmp.ne.s32.totalorder %s148, %s149
      %p160 = scmp.eq.s32.totalorder %s30, 0
      %p161 = por %p159, %p160
      %p162 = scmp.ne.s32.totalorder %s148, %s149
      %p163 = scmp.eq.s32.totalorder %s31, 1
      %p164 = por %p162, %p163
      %p166 = scmp.ne.s32.totalorder %s149, %s165
      %p167 = scmp.eq.s32.totalorder %s31, 0
      %p168 = por %p166, %p167
      %s169 = ssub.s32 %s25, %s32
      %p170 = scmp.eq.s32.totalorder %s169, 0
      %s172 = sadd.s32 %s171, 1
      %s173 = scalar_select %p170, %s171, %s172
      %p176 = pneg %p170
      %p177 = scmp.eq.s32.totalorder %s25, 1
      %p178 = por %p176, %p177
      %p179 = scmp.ne.s32.totalorder %s171, %s174
      %p180 = scmp.eq.s32.totalorder %s25, 0
      %p181 = por %p179, %p180
      %p182 = scmp.ne.s32.totalorder %s171, %s174
      %p183 = scmp.eq.s32.totalorder %s30, 1
      %p184 = por %p182, %p183
      %p185 = scmp.ne.s32.totalorder %s174, %s175
      %p186 = scmp.eq.s32.totalorder %s30, 0
      %p187 = por %p185, %p186
      %p188 = scmp.ne.s32.totalorder %s174, %s175
      %p189 = scmp.eq.s32.totalorder %s31, 1
      %p190 = por %p188, %p189
      %p192 = scmp.ne.s32.totalorder %s175, %s191
      %p193 = scmp.eq.s32.totalorder %s31, 0
      %p194 = por %p192, %p193
      %s195 = ssub.s32 %s25, %s32
      %p196 = scmp.eq.s32.totalorder %s195, 0
      %s198 = sadd.s32 %s197, 1
      %s199 = scalar_select %p196, %s197, %s198
      %p202 = pneg %p196
      %p203 = scmp.eq.s32.totalorder %s25, 1
      %p204 = por %p202, %p203
      %p205 = scmp.ne.s32.totalorder %s197, %s200
      %p206 = scmp.eq.s32.totalorder %s25, 0
      %p207 = por %p205, %p206
      %p208 = scmp.ne.s32.totalorder %s197, %s200
      %p209 = scmp.eq.s32.totalorder %s30, 1
      %p210 = por %p208, %p209
      %p211 = scmp.ne.s32.totalorder %s200, %s201
      %p212 = scmp.eq.s32.totalorder %s30, 0
      %p213 = por %p211, %p212
      %p214 = scmp.ne.s32.totalorder %s200, %s201
      %p215 = scmp.eq.s32.totalorder %s31, 1
      %p216 = por %p214, %p215
      %p218 = scmp.ne.s32.totalorder %s201, %s217
      %p219 = scmp.eq.s32.totalorder %s31, 0
      %p220 = por %p218, %p219
      %p221 = scmp.le.s32.totalorder 1, %s25
      %p222 = scmp.lt.s32.totalorder %s25, 3
      %p223 = pnand %p221, %p222
      %p224 = pneg %p223
      // Predicated region
      $region9: #{dense_block_forward.4} parent=5 // pred_check
        _
      $region10: #{dense_block_forward.4} parent=5 // pred_check_branch
        %226 = sbr.rel (%p223) target = $region12
      $region11: #{dense_block_forward.4} parent=5 // pred_region
        %s227 = ssub.s32 %s25, 1
        // Predicated region
        $region13: #{dense_block_forward.4} parent=11 // pred_check
          %p228 = pneg %p72
        $region14: #{dense_block_forward.4} parent=11 // pred_check_branch
          %230 = sbr.rel (%p228) target = $region16
        $region15: #{dense_block_forward.4} parent=11 // pred_region
          %s232 = ssub.s32 32, 32
          %233 = vsyncadd [#allocation6], %s232
          %s235 = sshll.u32 [#allocation5], 4
          %s236 = int_to_ptr.vmem [resolvable:$true] %s235
          %238 = dma.hbm_to_vmem [thread:$0]  %s1, 32, %s236, [#allocation6]
        $region16: #{dense_block_forward.4} parent=11 // pred_fallthru
          _
        // Predicated region
        $region17: #{dense_block_forward.4} parent=11 // pred_check
          %p239 = pneg %p93
        $region18: #{dense_block_forward.4} parent=11 // pred_check_branch
          %241 = sbr.rel (%p239) target = $region20
        $region19: #{dense_block_forward.4} parent=11 // pred_region
          %s243 = ssub.s32 32, 32
          %244 = vsyncadd [#allocation6], %s243
          %s246 = sshll.u32 [#allocation7], 4
          %s247 = int_to_ptr.vmem [resolvable:$true] %s246
          %249 = dma.hbm_to_vmem [thread:$0]  %s2, 32, %s247, [#allocation6]
        $region20: #{dense_block_forward.4} parent=11 // pred_fallthru
          _
        // Predicated region
        $region21: #{dense_block_forward.4} parent=11 // pred_check
          %p250 = pneg %p114
        $region22: #{dense_block_forward.4} parent=11 // pred_check_branch
          %252 = sbr.rel (%p250) target = $region24
        $region23: #{dense_block_forward.4} parent=11 // pred_region
          %s254 = ssub.s32 4608, 4608
          %255 = vsyncadd [#allocation9], %s254
          %s256 = sshll.u32 [#allocation8], 4
          %s257 = int_to_ptr.vmem [resolvable:$true] %s256
          %262 = dma.hbm_to_vmem [thread:$0]  %s3, 4608, %s257, [#allocation9], 128, 128, 8
        $region24: #{dense_block_forward.4} parent=11 // pred_fallthru
          _
        // Predicated region
        $region25: #{dense_block_forward.4} parent=11 // pred_check
          %p263 = pneg %p135
        $region26: #{dense_block_forward.4} parent=11 // pred_check_branch
          %265 = sbr.rel (%p263) target = $region28
        $region27: #{dense_block_forward.4} parent=11 // pred_region
          %s267 = ssub.s32 16, 16
          %268 = vsyncadd [#allocation9], %s267
          %s270 = sshll.u32 [#allocation10], 4
          %s271 = int_to_ptr.vmem [resolvable:$true] %s270
          %273 = dma.hbm_to_vmem [thread:$0]  %s4, 16, %s271, [#allocation9]
        $region28: #{dense_block_forward.4} parent=11 // pred_fallthru
          _
      $region12: #{dense_block_forward.4} parent=5 // pred_fallthru
        _
      %p274 = scmp.lt.s32.totalorder %s25, 2
      // Predicated region
      $region29: #{dense_block_forward.4} parent=5 // pred_check
        %p275 = pneg %p274
      $region30: #{dense_block_forward.4} parent=5 // pred_check_branch
        %277 = sbr.rel (%p275) target = $region32
      $region31: #{dense_block_forward.4} parent=5 // pred_region
        // Predicated region
        $region33: #{dense_block_forward.4} parent=31 // pred_check
          %p278 = pneg %p45
        $region34: #{dense_block_forward.4} parent=31 // pred_check_branch
          %280 = sbr.rel (%p278) target = $region36
        $region35: #{dense_block_forward.4} parent=31 // pred_region
          %s281 = sand.u32 %s35, 1
          %s282 = scalar_lea.sflag [#allocation3], %s281
          %s283 = sand.u32 %s35, 1
          %s284 = smul.addr %s283, 32
          %s285 = scalar_lea.vmem [#allocation2], %s284
          %s287 = ssub.s32 512, 512
          %288 = vsyncadd %s282, %s287
          %s289 = smul.addr %s25, 4
          %s290 = smul.addr %s289, 128
          %s291 = scalar_lea.hbm %s0, %s290
          %s292 = sshll.u32 %s285, 4
          %s293 = int_to_ptr.vmem [resolvable:$true] %s292
          %298 = dma.hbm_to_vmem [thread:$0]  %s291, 512, %s293, %s282, 256, 256, 16
        $region36: #{dense_block_forward.4} parent=31 // pred_fallthru
          _
      $region32: #{dense_block_forward.4} parent=5 // pred_fallthru
        _
      %p299 = scmp.le.s32.totalorder 1, %s25
      %p300 = scmp.lt.s32.totalorder %s25, 3
      %p301 = pnand %p299, %p300
      %p302 = pneg %p301
      // Predicated region
      $region37: #{dense_block_forward.4} parent=5 // pred_check
        _
      $region38: #{dense_block_forward.4} parent=5 // pred_check_branch
        %304 = sbr.rel (%p301) target = $region40
      $region39: #{dense_block_forward.4} parent=5 // pred_region
        %s305 = ssub.s32 %s25, 1
        %s306 = sand.u32 %s38, 1
        %s307 = scalar_lea.sflag [#allocation3], %s306
        %s308 = sand.u32 %s38, 1
        %s309 = smul.addr %s308, 32
        %s310 = scalar_lea.vmem [#allocation2], %s309
        // Predicated region
        $region41: #{dense_block_forward.4} parent=39 // pred_check
          %p311 = pneg %p51
        $region42: #{dense_block_forward.4} parent=39 // pred_check_branch
          %313 = sbr.rel (%p311) target = $region44
        $region43: #{dense_block_forward.4} parent=39 // pred_region
          %314 = dma.done %s307, 512
        $region44: #{dense_block_forward.4} parent=39 // pred_fallthru
          _
        // Predicated region
        $region45: #{dense_block_forward.4} parent=39 // pred_check
          %p315 = pneg %p72
        $region46: #{dense_block_forward.4} parent=39 // pred_check_branch
          %317 = sbr.rel (%p315) target = $region48
        $region47: #{dense_block_forward.4} parent=39 // pred_region
          %318 = dma.done [#allocation6], 32
        $region48: #{dense_block_forward.4} parent=39 // pred_fallthru
          _
        // Predicated region
        $region49: #{dense_block_forward.4} parent=39 // pred_check
          %p319 = pneg %p93
        $region50: #{dense_block_forward.4} parent=39 // pred_check_branch
          %321 = sbr.rel (%p319) target = $region52
        $region51: #{dense_block_forward.4} parent=39 // pred_region
          %322 = dma.done [#allocation6], 32
        $region52: #{dense_block_forward.4} parent=39 // pred_fallthru
          _
        // Predicated region
        $region53: #{dense_block_forward.4} parent=39 // pred_check
          %p323 = pneg %p114
        $region54: #{dense_block_forward.4} parent=39 // pred_check_branch
          %325 = sbr.rel (%p323) target = $region56
        $region55: #{dense_block_forward.4} parent=39 // pred_region
          %326 = dma.done [#allocation9], 4608
        $region56: #{dense_block_forward.4} parent=39 // pred_fallthru
          _
        // Predicated region
        $region57: #{dense_block_forward.4} parent=39 // pred_check
          %p327 = pneg %p135
        $region58: #{dense_block_forward.4} parent=39 // pred_check_branch
          %329 = sbr.rel (%p327) target = $region60
        $region59: #{dense_block_forward.4} parent=39 // pred_region
          %330 = dma.done [#allocation9], 16
        $region60: #{dense_block_forward.4} parent=39 // pred_fallthru
          _
        %s331 = sand.u32 %s38, 1
        %s332 = scalar_lea.sflag [#allocation3], %s331
        %s333 = sand.u32 %s38, 1
        %s334 = smul.addr %s333, 32
        %s335 = scalar_lea.vmem [#allocation2], %s334
        %p336 = pneg %p51
        %p337 = pneg %p48
        %p338 = pneg %p72
        %p339 = pneg %p69
        %p340 = pneg %p93
        %p341 = pneg %p90
        %p342 = pneg %p114
        %p343 = pneg %p111
        %p344 = pneg %p135
        %p345 = pneg %p132
        %p346 = pneg %p161
        %p347 = pneg %p158
        %s348 = sand.u32 %s148, 1
        %s349 = scalar_lea.sflag [#allocation4], %s348
        %s350 = sand.u32 %s148, 1
        %s351 = smul.addr %s350, 8
        %s352 = scalar_lea.vmem [#allocation11], %s351
        %p353 = pneg %p187
        %p354 = pneg %p184
        %s355 = sand.u32 %s30, 1
        %s356 = scalar_lea.sflag [#allocation13], %s355
        %s357 = sand.u32 %s174, 1
        %s358 = scalar_lea.vmem [#allocation12], %s357
        %p359 = pneg %p213
        %p360 = pneg %p210
        %s361 = sand.u32 %s30, 1
        %s362 = scalar_lea.sflag [#allocation13], %s361
        %s363 = sand.u32 %s200, 1
        %s364 = scalar_lea.vmem [#allocation14], %s363
        %v365 = vld [vmem:[%s310] sm:$0xff]
        %v366 = vld [vmem:[%s310 + $0x8] sm:$0xff]
        %v367 = vld [vmem:[%s310 + $0x10] sm:$0x1]
        %v368 = vld [vmem:[%s310 + $0x18] sm:$0x1]
        %v369 = vld [vmem:[#allocation5] sm:$0x3]
        %v371 = vlaneseq
        %v372 = vshrl.u32 %v371, 7
        %v373 = vsub.s32 0, %v372
        %v374 = vrot.slane %v369, %v373
        %v375 = vlaneseq
        %v376 = vshrl.u32 %v375, 7
        %v377 = vsub.s32 1, %v376
        %v378 = vrot.slane %v369, %v377
        %v381 = vmul.f32 %v365, %v374
        %v382 = vmul.f32 %v366, %v378
        %v383 = vmul.f32 %v367, %v374
        %v384 = vmul.f32 %v368, %v378
        %v385 = vld [vmem:[#allocation7] sm:$0x3]
        %v387 = vlaneseq
        %v388 = vshrl.u32 %v387, 7
        %v389 = vsub.s32 0, %v388
        %v390 = vrot.slane %v385, %v389
        %v391 = vlaneseq
        %v392 = vshrl.u32 %v391, 7
        %v393 = vsub.s32 1, %v392
        %v394 = vrot.slane %v385, %v393
        %v397 = vadd.f32 %v381, %v390
        %v398 = vadd.f32 %v382, %v394
        %v399 = vadd.f32 %v383, %v390
        %v400 = vadd.f32 %v384, %v394
        %v401 = vmax.f32 %v397, 0.0
        %v402 = vmax.f32 %v398, 0.0
        %v403 = vmax.f32 %v399, 0.0
        %v404 = vmax.f32 %v400, 0.0
        %v405 = vlaneseq
        %v406 = vshrl.u32 %v405, 7
        %v407 = vadd.s32 %v406, 8
        %v408 = vlaneseq
        %v409 = vand.u32 %v408, 127
        %v410 = vadd.s32 %v409, 128
        %vm411 = vcmp.eq.s32.totalorder %v406, 0
        %vm412 = vcmp.eq.s32.totalorder %v407, 0
        %vm413 = vcmp.lt.s32.totalorder %v409, 72
        %vm414 = vcmp.lt.s32.totalorder %v410, 72
        %vm415 = vmand %vm411, %vm413
        %vm416 = vmand %vm411, %vm414
        %vm417 = vmand %vm412, %vm413
        %vm418 = vmand %vm412, %vm414
        %vm419 = vcmp.eq.s32.totalorder %v406, 8
        %vm420 = vcmp.eq.s32.totalorder %v407, 8
        %vm421 = vcmp.ge.s32.totalorder %v409, 72
        %vm422 = vcmp.ge.s32.totalorder %v410, 72
        %vm423 = vmand %vm419, %vm421
        %vm424 = vmand %vm419, %vm422
        %vm425 = vmand %vm420, %vm421
        %vm426 = vmand %vm420, %vm422
        %vm427 = vmor %vm415, %vm423
        %vm428 = vmor %vm416, %vm424
        %vm429 = vmor %vm417, %vm425
        %vm430 = vmor %vm418, %vm426
        %v431 = vsel %vm427, 0.0, %v401
        %v432 = vsel %vm428, 0.0, %v402
        %v433 = vsel %vm429, 0.0, %v403
        %v434 = vsel %vm430, 0.0, %v404
        %vm439 = vcmask 1046528
        %v440 = vrot.slane %v431, 1
        %v441 = vrot.slane %v433, 1
        %v442 = vsel %vm439, %v440, %v441
        %v443 = vrot.slane %v432, 1
        %v444 = vrot.slane %v434, 1
        %v445 = vsel %vm439, %v443, %v444
        %446 = vrot.lane.b32.xlu0 %v442, 16
        %v447 = vpop.permute.xlu0 %446
        %448 = vrot.lane.b32.xlu0 %v445, 16
        %v449 = vpop.permute.xlu0 %448
        %vm450 = vcmask 130048
        %v451 = vsel %vm450, %v447, %v449
        %v453 = vsel %vm450, %v432, %v447
        %v454 = vld [vmem:[#allocation8] sm:$0xff]
        %v455 = vld [vmem:[#allocation8 + $0x8] sm:$0xff]
        %v456 = vld [vmem:[#allocation8 + $0x10] sm:$0xff]
        %v457 = vld [vmem:[#allocation8 + $0x18] sm:$0xff]
        %v458 = vld [vmem:[#allocation8 + $0x20] sm:$0xff]
        %v459 = vld [vmem:[#allocation8 + $0x28] sm:$0xff]
        %v460 = vld [vmem:[#allocation8 + $0x30] sm:$0xff]
        %v461 = vld [vmem:[#allocation8 + $0x38] sm:$0xff]
        %v462 = vld [vmem:[#allocation8 + $0x40] sm:$0xff]
        %v463 = vld [vmem:[#allocation8 + $0x48] sm:$0xff]
        %v464 = vld [vmem:[#allocation8 + $0x50] sm:$0xff]
        %v465 = vld [vmem:[#allocation8 + $0x58] sm:$0xff]
        %v466 = vld [vmem:[#allocation8 + $0x60] sm:$0xff]
        %v467 = vld [vmem:[#allocation8 + $0x68] sm:$0xff]
        %v468 = vld [vmem:[#allocation8 + $0x70] sm:$0xff]
        %v469 = vld [vmem:[#allocation8 + $0x78] sm:$0xff]
        %v470 = vld [vmem:[#allocation8 + $0x80] sm:$0xff]
        %v471 = vld [vmem:[#allocation8 + $0x88] sm:$0xff]
        %v472 = vld [vmem:[#allocation8 + $0x90] sm:$0xff]
        %v473 = vld [vmem:[#allocation8 + $0x98] sm:$0xff]
        %v474 = vld [vmem:[#allocation8 + $0xa0] sm:$0xff]
        %v475 = vld [vmem:[#allocation8 + $0xa8] sm:$0xff]
        %v476 = vld [vmem:[#allocation8 + $0xb0] sm:$0xff]
        %v477 = vld [vmem:[#allocation8 + $0xb8] sm:$0xff]
        %v478 = vld [vmem:[#allocation8 + $0xc0] sm:$0xff]
        %v479 = vld [vmem:[#allocation8 + $0xc8] sm:$0xff]
        %v480 = vld [vmem:[#allocation8 + $0xd0] sm:$0xff]
        %v481 = vld [vmem:[#allocation8 + $0xd8] sm:$0xff]
        %v482 = vld [vmem:[#allocation8 + $0xe0] sm:$0xff]
        %v483 = vld [vmem:[#allocation8 + $0xe8] sm:$0xff]
        %v484 = vld [vmem:[#allocation8 + $0xf0] sm:$0xff]
        %v485 = vld [vmem:[#allocation8 + $0xf8] sm:$0xff]
        %v486 = vld [vmem:[#allocation8 + $0x100] sm:$0xff]
        %v487 = vld [vmem:[#allocation8 + $0x108] sm:$0xff]
        %v488 = vld [vmem:[#allocation8 + $0x110] sm:$0xff]
        %v489 = vld [vmem:[#allocation8 + $0x118] sm:$0xff]
        %v490 = vld [vmem:[#allocation10] sm:$0x1]
        %v492 = vlaneseq
        %v493 = vshrl.u32 %v492, 7
        %v494 = vsub.s32 0, %v493
        %v495 = vrot.slane %v490, %v494
        %vm497 = vcmask 261120
        %v498 = vsel %vm497, %v451, 0
        %500 = vmatprep.subr.mxu0 0.0
        %501 = vmatpush1.msra.mxu0 %v454
        %502 = vmatprep.subr.mxu0 0.0
        %503 = vmatpush1.msra.mxu0 %v455
        %504 = vmatprep.subr.mxu0 0.0
        %505 = vmatpush1.msra.mxu0 %v456
        %506 = vmatprep.subr.mxu0 0.0
        %507 = vmatpush1.msra.mxu0 %v457
        %508 = vmatprep.subr.mxu0 0.0
        %509 = vmatpush1.msra.mxu0 %v458
        %510 = vmatprep.subr.mxu0 0.0
        %511 = vmatpush1.msra.mxu0 %v459
        %512 = vmatprep.subr.mxu0 0.0
        %513 = vmatpush1.msra.mxu0 %v460
        %514 = vmatprep.subr.mxu0 0.0
        %515 = vmatpush1.msra.mxu0 %v461
        %516 = vmatprep.subr.mxu0 0.0
        %517 = vmatpush1.msra.mxu0 %v462
        %518 = vmatprep.subr.mxu0 0.0
        %519 = vmatpush1.msra.mxu0 %v463
        %520 = vmatprep.subr.mxu0 0.0
        %521 = vmatpush1.msra.mxu0 %v464
        %522 = vmatprep.subr.mxu0 0.0
        %523 = vmatpush1.msra.mxu0 %v465
        %524 = vmatprep.subr.mxu0 0.0
        %525 = vmatpush1.msra.mxu0 %v466
        %526 = vmatprep.subr.mxu0 0.0
        %527 = vmatpush1.msra.mxu0 %v467
        %528 = vmatprep.subr.mxu0 0.0
        %529 = vmatpush1.msra.mxu0 %v468
        %530 = vmatprep.subr.mxu0 0.0
        %531 = vmatpush1.msra.mxu0 %v469
        %532 = vmatprep.subr.mxu0 0.0
        %533 = vmatpush1.msra.mxu0 %v470
        %534 = vmatprep.subr.mxu0 0.0
        %535 = vmatpush1.msra.mxu0 %v471
        %536 = vmatprep.subr.mxu0 0.0
        %537 = vmatpush1.msra.mxu0 %v472
        %538 = vmatprep.subr.mxu0 0.0
        %539 = vmatpush1.msra.mxu0 %v473
        %540 = vmatprep.subr.mxu0 0.0
        %541 = vmatpush1.msra.mxu0 %v474
        %542 = vmatprep.subr.mxu0 0.0
        %543 = vmatpush1.msra.mxu0 %v475
        %544 = vmatprep.subr.mxu0 0.0
        %545 = vmatpush1.msra.mxu0 %v476
        %546 = vmatprep.subr.mxu0 0.0
        %547 = vmatpush1.msra.mxu0 %v477
        %548 = vmatprep.subr.mxu0 0.0
        %549 = vmatpush1.msra.mxu0 %v478
        %550 = vmatprep.subr.mxu0 0.0
        %551 = vmatpush1.msra.mxu0 %v479
        %552 = vmatprep.subr.mxu0 0.0
        %553 = vmatpush1.msra.mxu0 %v480
        %554 = vmatprep.subr.mxu0 0.0
        %555 = vmatpush1.msra.mxu0 %v481
        %556 = vmatprep.subr.mxu0 0.0
        %557 = vmatpush1.msra.mxu0 %v482
        %558 = vmatprep.subr.mxu0 0.0
        %559 = vmatpush1.msra.mxu0 %v483
        %560 = vmatprep.subr.mxu0 0.0
        %561 = vmatpush1.msra.mxu0 %v484
        %562 = vmatprep.subr.mxu0 0.0
        %563 = vmatpush1.msra.mxu0 %v485
        %564 = vmatprep.mubr.f32.mxu0 %v453
        %565 = vmatmul.mubr.f32.gmra.mrb[0].mxu0 %v431
        %v566 = vpop.f32.mrb[0].mxu0
        %v567 = vadd.f32 %v495, %v566
        %v568 = vpop.f32.mrb[0].mxu0
        %569 = vdwg.mxu0
        %570 = vmatprep.subr.mxu0 0.0
        %571 = vmatpush1.msra.mxu0 %v486
        %572 = vmatprep.subr.mxu0 0.0
        %573 = vmatpush1.msra.mxu0 %v487
        %574 = vmatprep.subr.mxu0 0.0
        %575 = vmatpush1.msra.mxu0 %v488
        %576 = vmatprep.subr.mxu0 0.0
        %577 = vmatpush1.msra.mxu0 %v489
        %578 = vmatprep.subr.mxu0 0.0
        %579 = vmatpush1.msra.mxu0 0.0
        %580 = vmatprep.subr.mxu0 0.0
        %581 = vmatpush1.msra.mxu0 0.0
        %582 = vmatprep.subr.mxu0 0.0
        %583 = vmatpush1.msra.mxu0 0.0
        %584 = vmatprep.subr.mxu0 0.0
        %585 = vmatpush1.msra.mxu0 0.0
        %586 = vmatprep.subr.mxu0 0.0
        %587 = vmatpush1.msra.mxu0 0.0
        %588 = vmatprep.subr.mxu0 0.0
        %589 = vmatpush1.msra.mxu0 0.0
        %590 = vmatprep.subr.mxu0 0.0
        %591 = vmatpush1.msra.mxu0 0.0
        %592 = vmatprep.subr.mxu0 0.0
        %593 = vmatpush1.msra.mxu0 0.0
        %594 = vmatprep.subr.mxu0 0.0
        %595 = vmatpush1.msra.mxu0 0.0
        %596 = vmatprep.subr.mxu0 0.0
        %597 = vmatpush1.msra.mxu0 0.0
        %598 = vmatprep.subr.mxu0 0.0
        %599 = vmatpush1.msra.mxu0 0.0
        %600 = vmatprep.subr.mxu0 0.0
        %601 = vmatpush1.msra.mxu0 0.0
        %602 = vmatprep.subr.mxu0 0.0
        %603 = vmatpush1.msra.mxu0 0.0
        %604 = vmatprep.subr.mxu0 0.0
        %605 = vmatpush1.msra.mxu0 0.0
        %606 = vmatprep.subr.mxu0 0.0
        %607 = vmatpush1.msra.mxu0 0.0
        %608 = vmatprep.subr.mxu0 0.0
        %609 = vmatpush1.msra.mxu0 0.0
        %610 = vmatprep.subr.mxu0 0.0
        %611 = vmatpush1.msra.mxu0 0.0
        %612 = vmatprep.subr.mxu0 0.0
        %613 = vmatpush1.msra.mxu0 0.0
        %614 = vmatprep.subr.mxu0 0.0
        %615 = vmatpush1.msra.mxu0 0.0
        %616 = vmatprep.subr.mxu0 0.0
        %617 = vmatpush1.msra.mxu0 0.0
        %618 = vmatprep.subr.mxu0 0.0
        %619 = vmatpush1.msra.mxu0 0.0
        %620 = vmatprep.subr.mxu0 0.0
        %621 = vmatpush1.msra.mxu0 0.0
        %622 = vmatprep.subr.mxu0 0.0
        %623 = vmatpush1.msra.mxu0 0.0
        %624 = vmatprep.subr.mxu0 0.0
        %625 = vmatpush1.msra.mxu0 0.0
        %626 = vmatprep.subr.mxu0 0.0
        %627 = vmatpush1.msra.mxu0 0.0
        %628 = vmatprep.subr.mxu0 0.0
        %629 = vmatpush1.msra.mxu0 0.0
        %630 = vmatprep.subr.mxu0 0.0
        %631 = vmatpush1.msra.mxu0 0.0
        %632 = vmatprep.subr.mxu0 0.0
        %633 = vmatpush1.msra.mxu0 0.0
        %634 = vmatprep.mubr.f32.mxu0 0.0
        %635 = vmatmul.mubr.f32.gmra.mrb[0].mxu0 %v498
        %v636 = vpop.f32.mrb[0].mxu0
        %v637 = vadd.f32 %v567, %v636
        %v638 = vpop.f32.mrb[0].mxu0
        %639 = vdwg.mxu0
        %640 = vst [vmem:[%s352] sm:$0xff] %v637
        %v641 = vrot.slane %v637, 4
        %v642 = vadd.f32 %v637, %v641
        %v643 = vrot.slane %v642, 2
        %v644 = vadd.f32 %v642, %v643
        %v645 = vrot.slane %v644, 1
        %v646 = vadd.f32 %v644, %v645
        %647 = vst [vmem:[%s358] sm:$0x1] %v646
        %v648 = vmul.f32 %v637, %v637
        %v649 = vrot.slane %v648, 4
        %v650 = vadd.f32 %v648, %v649
        %v651 = vrot.slane %v650, 2
        %v652 = vadd.f32 %v650, %v651
        %v653 = vrot.slane %v652, 1
        %v654 = vadd.f32 %v652, %v653
        %655 = vst [vmem:[%s364] sm:$0x1] %v654
        %s656 = sand.u32 %s148, 1
        %s657 = scalar_lea.sflag [#allocation4], %s656
        %s658 = sand.u32 %s148, 1
        %s659 = smul.addr %s658, 8
        %s660 = scalar_lea.vmem [#allocation11], %s659
        %s661 = sand.u32 %s30, 1
        %s662 = scalar_lea.sflag [#allocation13], %s661
        %s663 = sand.u32 %s174, 1
        %s664 = scalar_lea.vmem [#allocation12], %s663
        %s665 = sand.u32 %s30, 1
        %s666 = scalar_lea.sflag [#allocation13], %s665
        %s667 = sand.u32 %s200, 1
        %s668 = scalar_lea.vmem [#allocation14], %s667
        // Predicated region
        $region61: #{dense_block_forward.4} parent=39 // pred_check
          %p669 = pneg %p158
        $region62: #{dense_block_forward.4} parent=39 // pred_check_branch
          %671 = sbr.rel (%p669) target = $region64
        $region63: #{dense_block_forward.4} parent=39 // pred_region
          %s673 = ssub.s32 128, 128
          %674 = vsyncadd %s657, %s673
          %s675 = smul.addr %s30, 128
          %s676 = scalar_lea.hbm %s5, %s675
          %s678 = sshll.u32 %s660, 4
          %s679 = int_to_ptr.vmem [resolvable:$true] %s678
          %681 = dma.vmem_to_hbm [thread:$0]  %s679, 128, %s676, %s657
        $region64: #{dense_block_forward.4} parent=39 // pred_fallthru
          _
        // Predicated region
        $region65: #{dense_block_forward.4} parent=39 // pred_check
          %p682 = pneg %p184
        $region66: #{dense_block_forward.4} parent=39 // pred_check_branch
          %684 = sbr.rel (%p682) target = $region68
        $region67: #{dense_block_forward.4} parent=39 // pred_region
          %s686 = ssub.s32 16, 16
          %687 = vsyncadd %s662, %s686
          %s688 = smul.addr %s30, 16
          %s689 = scalar_lea.hbm %s6, %s688
          %s691 = sshll.u32 %s664, 4
          %s692 = int_to_ptr.vmem [resolvable:$true] %s691
          %694 = dma.vmem_to_hbm [thread:$0]  %s692, 16, %s689, %s662
        $region68: #{dense_block_forward.4} parent=39 // pred_fallthru
          _
        // Predicated region
        $region69: #{dense_block_forward.4} parent=39 // pred_check
          %p695 = pneg %p210
        $region70: #{dense_block_forward.4} parent=39 // pred_check_branch
          %697 = sbr.rel (%p695) target = $region72
        $region71: #{dense_block_forward.4} parent=39 // pred_region
          %s699 = ssub.s32 16, 16
          %700 = vsyncadd %s666, %s699
          %s701 = smul.addr %s30, 16
          %s702 = scalar_lea.hbm %s7, %s701
          %s704 = sshll.u32 %s668, 4
          %s705 = int_to_ptr.vmem [resolvable:$true] %s704
          %707 = dma.vmem_to_hbm [thread:$0]  %s705, 16, %s702, %s666
        $region72: #{dense_block_forward.4} parent=39 // pred_fallthru
          _
      $region40: #{dense_block_forward.4} parent=5 // pred_fallthru
        _
      %p708 = scmp.le.s32.totalorder 2, %s25
      // Predicated region
      $region73: #{dense_block_forward.4} parent=5 // pred_check
        %p709 = pneg %p708
      $region74: #{dense_block_forward.4} parent=5 // pred_check_branch
        %711 = sbr.rel (%p709) target = $region76
      $region75: #{dense_block_forward.4} parent=5 // pred_region
        %s712 = ssub.s32 %s25, 2
        // Predicated region
        $region77: #{dense_block_forward.4} parent=75 // pred_check
          %p713 = pneg %p164
        $region78: #{dense_block_forward.4} parent=75 // pred_check_branch
          %715 = sbr.rel (%p713) target = $region80
        $region79: #{dense_block_forward.4} parent=75 // pred_region
          %s716 = sand.u32 %s149, 1
          %s717 = scalar_lea.sflag [#allocation4], %s716
          %s718 = sand.u32 %s149, 1
          %s719 = smul.addr %s718, 8
          %s720 = scalar_lea.vmem [#allocation11], %s719
          %721 = dma.done %s717, 128
        $region80: #{dense_block_forward.4} parent=75 // pred_fallthru
          _
        // Predicated region
        $region81: #{dense_block_forward.4} parent=75 // pred_check
          %p722 = pneg %p190
        $region82: #{dense_block_forward.4} parent=75 // pred_check_branch
          %724 = sbr.rel (%p722) target = $region84
        $region83: #{dense_block_forward.4} parent=75 // pred_region
          %s725 = sand.u32 %s31, 1
          %s726 = scalar_lea.sflag [#allocation13], %s725
          %s727 = sand.u32 %s175, 1
          %s728 = scalar_lea.vmem [#allocation12], %s727
          %729 = dma.done %s726, 16
        $region84: #{dense_block_forward.4} parent=75 // pred_fallthru
          _
        // Predicated region
        $region85: #{dense_block_forward.4} parent=75 // pred_check
          %p730 = pneg %p216
        $region86: #{dense_block_forward.4} parent=75 // pred_check_branch
          %732 = sbr.rel (%p730) target = $region88
        $region87: #{dense_block_forward.4} parent=75 // pred_region
          %s733 = sand.u32 %s31, 1
          %s734 = scalar_lea.sflag [#allocation13], %s733
          %s735 = sand.u32 %s201, 1
          %s736 = scalar_lea.vmem [#allocation14], %s735
          %737 = dma.done %s734, 16
        $region88: #{dense_block_forward.4} parent=75 // pred_fallthru
          _
      $region76: #{dense_block_forward.4} parent=5 // pred_fallthru
        _
    $region6: #{dense_block_forward.4} parent=1 // loop_footer
      %s29 = sadd.s32 1, %s25
    $region7: #{dense_block_forward.4} parent=1 // loop_footer_branch
      %24 = sbr.rel target = $region3
    $region8: #{dense_block_forward.4} parent=1 // loop_exit
      _
    %738 = vsyncpa [#allocation3], 1
    %s739 = scalar_lea.sflag [#allocation3], 1
    %740 = vsyncpa %s739, 1
    %741 = vsyncpa [#allocation6], 1
    %742 = vsyncpa [#allocation9], 1
    %743 = vsyncpa [#allocation4], 1
    %s744 = scalar_lea.sflag [#allocation4], 1
    %745 = vsyncpa %s744, 1
    %746 = vsyncpa [#allocation13], 1
    %s747 = scalar_lea.sflag [#allocation13], 1
    %748 = vsyncpa %s747, 1

// kernel: dense_block_forward.5
$region0: #{dense_block_forward.5}
  #allocation0 [shape = 'u32[]', space=smem, size = 0x4, offset = 0x4, fixed_abs, tag = 'smem constant byte address 0x4 - core index']
  #allocation1 [shape = 'u32[144,128]{1,0:T(1,128)}', space=vmem, size = 0x12000, scoped, tag = 'internal scratch']
  %s0 = inlined_call_operand.hbm [shape: f32[2,9,288], index: 0, kind: input, shape index: {}]
  %s1 = inlined_call_operand.hbm [shape: f32[1,288], index: 1, kind: input, shape index: {}]
  %s2 = inlined_call_operand.hbm [shape: f32[1,288], index: 2, kind: input, shape index: {}]
  %s3 = inlined_call_operand.hbm [shape: f32[576,128], index: 3, kind: input, shape index: {}]
  %s4 = inlined_call_operand.hbm [shape: f32[1,128], index: 4, kind: input, shape index: {}]
  %s5 = inlined_call_operand.hbm [shape: f32[2,8,128], index: 5, kind: output, shape index: {0}]
  %s6 = inlined_call_operand.hbm [shape: f32[2,1,128], index: 6, kind: output, shape index: {1}]
  %s7 = inlined_call_operand.hbm [shape: f32[2,1,128], index: 7, kind: output, shape index: {2}]
  %8 = xla_tuple %s5, %s6, %s7
  %s9 = sld [smem:[#allocation0]]
  $region89: #{dense_block_forward.5} parent=0
    _
  %s11 = ssub.s32 1, %s9
  %s12 = scalar_select 0, %s11, %s9
  $region1: #{dense_block_forward.5} parent=0
    #allocation2 [shape = 'u8[49152]{0}', space=vmem, size = 0xc000, scoped, tag = 'input window, operand 0']
    #allocation3 [shape = 's32[2]{0}', space=sflag, size = 0x8, scoped, tag = 'scoped memory for dense_block_forward.5']
    #allocation4 [shape = 's32[2]{0}', space=sflag, size = 0x8, scoped, tag = 'scoped memory for dense_block_forward.5']
    #allocation5 [shape = 'u8[1536]{0}', space=vmem, size = 0x800, scoped, tag = 'input window, operand 1, single buffered']
    #allocation6 [shape = 's32[1]{0}', space=sflag, size = 0x4, scoped, tag = 'scoped memory for dense_block_forward.5']
    #allocation7 [shape = 'u8[1536]{0}', space=vmem, size = 0x800, scoped, tag = 'input window, operand 2, single buffered']
    #allocation8 [shape = 'u8[294912]{0}', space=vmem, size = 0x48000, scoped, tag = 'input window, operand 3, single buffered']
    #allocation9 [shape = 's32[1]{0}', space=sflag, size = 0x4, scoped, tag = 'scoped memory for dense_block_forward.5']
    #allocation10 [shape = 'u8[512]{0}', space=vmem, size = 0x400, scoped, tag = 'input window, operand 4, single buffered']
    #allocation11 [shape = 'u8[8192]{0}', space=vmem, size = 0x2000, scoped, tag = 'output window, operand 0']
    #allocation12 [shape = 'u8[1024]{0}', space=vmem, size = 0x400, scoped, tag = 'output window, operand 1']
    #allocation13 [shape = 's32[2]{0}', space=sflag, size = 0x8, scoped, tag = 'scoped memory for dense_block_forward.5']
    #allocation14 [shape = 'u8[1024]{0}', space=vmem, size = 0x400, scoped, tag = 'output window, operand 2']
    %13 = vsyncpa [#allocation3], 0
    %s14 = scalar_lea.sflag [#allocation3], 1
    %15 = vsyncpa %s14, 0
    %16 = vsyncpa [#allocation6], 0
    %17 = vsyncpa [#allocation9], 0
    %18 = vsyncpa [#allocation4], 0
    %s19 = scalar_lea.sflag [#allocation4], 1
    %20 = vsyncpa %s19, 0
    %21 = vsyncpa [#allocation13], 0
    %s22 = scalar_lea.sflag [#allocation13], 1
    %23 = vsyncpa %s22, 0
    loop: start=0, step=1, limit=4
    $region2: #{dense_block_forward.5} parent=1 // loop_pre_header
      _
    $region3: #{dense_block_forward.5} parent=1 // loop_header
      %s25 = sphi 0, %s29
      %p26 = scmp.ge.s32.totalorder %s25, 4
      %s35 = sphi 0, %s37
      %s38 = sphi 0, %s35
      %s39 = sphi 0, %s38
      %s55 = sphi 0, %s39
      %s59 = sphi 0, %s59
      %s61 = sphi 0, %s59
      %s62 = sphi 0, %s61
      %s76 = sphi 0, %s62
      %s80 = sphi 0, %s80
      %s82 = sphi 0, %s80
      %s83 = sphi 0, %s82
      %s97 = sphi 0, %s83
      %s101 = sphi 0, %s101
      %s103 = sphi 0, %s101
      %s104 = sphi 0, %s103
      %s118 = sphi 0, %s104
      %s122 = sphi 0, %s122
      %s124 = sphi 0, %s122
      %s125 = sphi 0, %s124
      %s139 = sphi 0, %s125
      %s145 = sphi 0, %s147
      %s148 = sphi 0, %s145
      %s149 = sphi 0, %s148
      %s165 = sphi 0, %s149
      %s171 = sphi 0, %s173
      %s174 = sphi 0, %s171
      %s175 = sphi 0, %s174
      %s191 = sphi 0, %s175
      %s197 = sphi 0, %s199
      %s200 = sphi 0, %s197
      %s201 = sphi 0, %s200
      %s217 = sphi 0, %s201
    $region4: #{dense_block_forward.5} parent=1 // loop_header_branch
      %28 = sbr.rel (%p26) target = $region8
    $region5: #{dense_block_forward.5} parent=1 // loop_body
      %s30 = ssub.s32 %s25, 1
      %s31 = ssub.s32 %s25, 2
      %s32 = sadd.s32 %s25, 1
      %s33 = ssub.s32 %s25, %s32
      %p34 = scmp.eq.s32.totalorder %s33, 0
      %s36 = sadd.s32 %s35, 1
      %s37 = scalar_select %p34, %s35, %s36
      %p40 = pneg %p34
      %p41 = scmp.eq.s32.totalorder %s25, 1
      %p42 = por %p40, %p41
      %p43 = scmp.ne.s32.totalorder %s35, %s38
      %p44 = scmp.eq.s32.totalorder %s25, 0
      %p45 = por %p43, %p44
      %p46 = scmp.ne.s32.totalorder %s35, %s38
      %p47 = scmp.eq.s32.totalorder %s30, 1
      %p48 = por %p46, %p47
      %p49 = scmp.ne.s32.totalorder %s38, %s39
      %p50 = scmp.eq.s32.totalorder %s30, 0
      %p51 = por %p49, %p50
      %p52 = scmp.ne.s32.totalorder %s38, %s39
      %p53 = scmp.eq.s32.totalorder %s31, 1
      %p54 = por %p52, %p53
      %p56 = scmp.ne.s32.totalorder %s39, %s55
      %p57 = scmp.eq.s32.totalorder %s31, 0
      %p58 = por %p56, %p57
      %s60 = sadd.s32 %s59, 1
      %p63 = scmp.eq.s32.totalorder %s25, 1
      %p64 = scmp.ne.s32.totalorder %s59, %s61
      %p65 = scmp.eq.s32.totalorder %s25, 0
      %p66 = por %p64, %p65
      %p67 = scmp.ne.s32.totalorder %s59, %s61
      %p68 = scmp.eq.s32.totalorder %s30, 1
      %p69 = por %p67, %p68
      %p70 = scmp.ne.s32.totalorder %s61, %s62
      %p71 = scmp.eq.s32.totalorder %s30, 0
      %p72 = por %p70, %p71
      %p73 = scmp.ne.s32.totalorder %s61, %s62
      %p74 = scmp.eq.s32.totalorder %s31, 1
      %p75 = por %p73, %p74
      %p77 = scmp.ne.s32.totalorder %s62, %s76
      %p78 = scmp.eq.s32.totalorder %s31, 0
      %p79 = por %p77, %p78
      %s81 = sadd.s32 %s80, 1
      %p84 = scmp.eq.s32.totalorder %s25, 1
      %p85 = scmp.ne.s32.totalorder %s80, %s82
      %p86 = scmp.eq.s32.totalorder %s25, 0
      %p87 = por %p85, %p86
      %p88 = scmp.ne.s32.totalorder %s80, %s82
      %p89 = scmp.eq.s32.totalorder %s30, 1
      %p90 = por %p88, %p89
      %p91 = scmp.ne.s32.totalorder %s82, %s83
      %p92 = scmp.eq.s32.totalorder %s30, 0
      %p93 = por %p91, %p92
      %p94 = scmp.ne.s32.totalorder %s82, %s83
      %p95 = scmp.eq.s32.totalorder %s31, 1
      %p96 = por %p94, %p95
      %p98 = scmp.ne.s32.totalorder %s83, %s97
      %p99 = scmp.eq.s32.totalorder %s31, 0
      %p100 = por %p98, %p99
      %s102 = sadd.s32 %s101, 1
      %p105 = scmp.eq.s32.totalorder %s25, 1
      %p106 = scmp.ne.s32.totalorder %s101, %s103
      %p107 = scmp.eq.s32.totalorder %s25, 0
      %p108 = por %p106, %p107
      %p109 = scmp.ne.s32.totalorder %s101, %s103
      %p110 = scmp.eq.s32.totalorder %s30, 1
      %p111 = por %p109, %p110
      %p112 = scmp.ne.s32.totalorder %s103, %s104
      %p113 = scmp.eq.s32.totalorder %s30, 0
      %p114 = por %p112, %p113
      %p115 = scmp.ne.s32.totalorder %s103, %s104
      %p116 = scmp.eq.s32.totalorder %s31, 1
      %p117 = por %p115, %p116
      %p119 = scmp.ne.s32.totalorder %s104, %s118
      %p120 = scmp.eq.s32.totalorder %s31, 0
      %p121 = por %p119, %p120
      %s123 = sadd.s32 %s122, 1
      %p126 = scmp.eq.s32.totalorder %s25, 1
      %p127 = scmp.ne.s32.totalorder %s122, %s124
      %p128 = scmp.eq.s32.totalorder %s25, 0
      %p129 = por %p127, %p128
      %p130 = scmp.ne.s32.totalorder %s122, %s124
      %p131 = scmp.eq.s32.totalorder %s30, 1
      %p132 = por %p130, %p131
      %p133 = scmp.ne.s32.totalorder %s124, %s125
      %p134 = scmp.eq.s32.totalorder %s30, 0
      %p135 = por %p133, %p134
      %p136 = scmp.ne.s32.totalorder %s124, %s125
      %p137 = scmp.eq.s32.totalorder %s31, 1
      %p138 = por %p136, %p137
      %p140 = scmp.ne.s32.totalorder %s125, %s139
      %p141 = scmp.eq.s32.totalorder %s31, 0
      %p142 = por %p140, %p141
      %s143 = ssub.s32 %s25, %s32
      %p144 = scmp.eq.s32.totalorder %s143, 0
      %s146 = sadd.s32 %s145, 1
      %s147 = scalar_select %p144, %s145, %s146
      %p150 = pneg %p144
      %p151 = scmp.eq.s32.totalorder %s25, 1
      %p152 = por %p150, %p151
      %p153 = scmp.ne.s32.totalorder %s145, %s148
      %p154 = scmp.eq.s32.totalorder %s25, 0
      %p155 = por %p153, %p154
      %p156 = scmp.ne.s32.totalorder %s145, %s148
      %p157 = scmp.eq.s32.totalorder %s30, 1
      %p158 = por %p156, %p157
      %p159 = scmp.ne.s32.totalorder %s148, %s149
      %p160 = scmp.eq.s32.totalorder %s30, 0
      %p161 = por %p159, %p160
      %p162 = scmp.ne.s32.totalorder %s148, %s149
      %p163 = scmp.eq.s32.totalorder %s31, 1
      %p164 = por %p162, %p163
      %p166 = scmp.ne.s32.totalorder %s149, %s165
      %p167 = scmp.eq.s32.totalorder %s31, 0
      %p168 = por %p166, %p167
      %s169 = ssub.s32 %s25, %s32
      %p170 = scmp.eq.s32.totalorder %s169, 0
      %s172 = sadd.s32 %s171, 1
      %s173 = scalar_select %p170, %s171, %s172
      %p176 = pneg %p170
      %p177 = scmp.eq.s32.totalorder %s25, 1
      %p178 = por %p176, %p177
      %p179 = scmp.ne.s32.totalorder %s171, %s174
      %p180 = scmp.eq.s32.totalorder %s25, 0
      %p181 = por %p179, %p180
      %p182 = scmp.ne.s32.totalorder %s171, %s174
      %p183 = scmp.eq.s32.totalorder %s30, 1
      %p184 = por %p182, %p183
      %p185 = scmp.ne.s32.totalorder %s174, %s175
      %p186 = scmp.eq.s32.totalorder %s30, 0
      %p187 = por %p185, %p186
      %p188 = scmp.ne.s32.totalorder %s174, %s175
      %p189 = scmp.eq.s32.totalorder %s31, 1
      %p190 = por %p188, %p189
      %p192 = scmp.ne.s32.totalorder %s175, %s191
      %p193 = scmp.eq.s32.totalorder %s31, 0
      %p194 = por %p192, %p193
      %s195 = ssub.s32 %s25, %s32
      %p196 = scmp.eq.s32.totalorder %s195, 0
      %s198 = sadd.s32 %s197, 1
      %s199 = scalar_select %p196, %s197, %s198
      %p202 = pneg %p196
      %p203 = scmp.eq.s32.totalorder %s25, 1
      %p204 = por %p202, %p203
      %p205 = scmp.ne.s32.totalorder %s197, %s200
      %p206 = scmp.eq.s32.totalorder %s25, 0
      %p207 = por %p205, %p206
      %p208 = scmp.ne.s32.totalorder %s197, %s200
      %p209 = scmp.eq.s32.totalorder %s30, 1
      %p210 = por %p208, %p209
      %p211 = scmp.ne.s32.totalorder %s200, %s201
      %p212 = scmp.eq.s32.totalorder %s30, 0
      %p213 = por %p211, %p212
      %p214 = scmp.ne.s32.totalorder %s200, %s201
      %p215 = scmp.eq.s32.totalorder %s31, 1
      %p216 = por %p214, %p215
      %p218 = scmp.ne.s32.totalorder %s201, %s217
      %p219 = scmp.eq.s32.totalorder %s31, 0
      %p220 = por %p218, %p219
      %p221 = scmp.le.s32.totalorder 1, %s25
      %p222 = scmp.lt.s32.totalorder %s25, 3
      %p223 = pnand %p221, %p222
      %p224 = pneg %p223
      // Predicated region
      $region9: #{dense_block_forward.5} parent=5 // pred_check
        _
      $region10: #{dense_block_forward.5} parent=5 // pred_check_branch
        %226 = sbr.rel (%p223) target = $region12
      $region11: #{dense_block_forward.5} parent=5 // pred_region
        %s227 = ssub.s32 %s25, 1
        // Predicated region
        $region13: #{dense_block_forward.5} parent=11 // pred_check
          %p228 = pneg %p72
        $region14: #{dense_block_forward.5} parent=11 // pred_check_branch
          %230 = sbr.rel (%p228) target = $region16
        $region15: #{dense_block_forward.5} parent=11 // pred_region
          %s232 = ssub.s32 48, 48
          %233 = vsyncadd [#allocation6], %s232
          %s235 = sshll.u32 [#allocation5], 4
          %s236 = int_to_ptr.vmem [resolvable:$true] %s235
          %238 = dma.hbm_to_vmem [thread:$0]  %s1, 48, %s236, [#allocation6]
        $region16: #{dense_block_forward.5} parent=11 // pred_fallthru
          _
        // Predicated region
        $region17: #{dense_block_forward.5} parent=11 // pred_check
          %p239 = pneg %p93
        $region18: #{dense_block_forward.5} parent=11 // pred_check_branch
          %241 = sbr.rel (%p239) target = $region20
        $region19: #{dense_block_forward.5} parent=11 // pred_region
          %s243 = ssub.s32 48, 48
          %244 = vsyncadd [#allocation6], %s243
          %s246 = sshll.u32 [#allocation7], 4
          %s247 = int_to_ptr.vmem [resolvable:$true] %s246
          %249 = dma.hbm_to_vmem [thread:$0]  %s2, 48, %s247, [#allocation6]
        $region20: #{dense_block_forward.5} parent=11 // pred_fallthru
          _
        // Predicated region
        $region21: #{dense_block_forward.5} parent=11 // pred_check
          %p250 = pneg %p114
        $region22: #{dense_block_forward.5} parent=11 // pred_check_branch
          %252 = sbr.rel (%p250) target = $region24
        $region23: #{dense_block_forward.5} parent=11 // pred_region
          %s254 = ssub.s32 9216, 9216
          %255 = vsyncadd [#allocation9], %s254
          %s256 = sshll.u32 [#allocation8], 4
          %s257 = int_to_ptr.vmem [resolvable:$true] %s256
          %262 = dma.hbm_to_vmem [thread:$0]  %s3, 9216, %s257, [#allocation9], 128, 128, 8
        $region24: #{dense_block_forward.5} parent=11 // pred_fallthru
          _
        // Predicated region
        $region25: #{dense_block_forward.5} parent=11 // pred_check
          %p263 = pneg %p135
        $region26: #{dense_block_forward.5} parent=11 // pred_check_branch
          %265 = sbr.rel (%p263) target = $region28
        $region27: #{dense_block_forward.5} parent=11 // pred_region
          %s267 = ssub.s32 16, 16
          %268 = vsyncadd [#allocation9], %s267
          %s270 = sshll.u32 [#allocation10], 4
          %s271 = int_to_ptr.vmem [resolvable:$true] %s270
          %273 = dma.hbm_to_vmem [thread:$0]  %s4, 16, %s271, [#allocation9]
        $region28: #{dense_block_forward.5} parent=11 // pred_fallthru
          _
      $region12: #{dense_block_forward.5} parent=5 // pred_fallthru
        _
      %p274 = scmp.lt.s32.totalorder %s25, 2
      // Predicated region
      $region29: #{dense_block_forward.5} parent=5 // pred_check
        %p275 = pneg %p274
      $region30: #{dense_block_forward.5} parent=5 // pred_check_branch
        %277 = sbr.rel (%p275) target = $region32
      $region31: #{dense_block_forward.5} parent=5 // pred_region
        // Predicated region
        $region33: #{dense_block_forward.5} parent=31 // pred_check
          %p278 = pneg %p45
        $region34: #{dense_block_forward.5} parent=31 // pred_check_branch
          %280 = sbr.rel (%p278) target = $region36
        $region35: #{dense_block_forward.5} parent=31 // pred_region
          %s281 = sand.u32 %s35, 1
          %s282 = scalar_lea.sflag [#allocation3], %s281
          %s283 = sand.u32 %s35, 1
          %s284 = smul.addr %s283, 48
          %s285 = scalar_lea.vmem [#allocation2], %s284
          %s287 = ssub.s32 768, 768
          %288 = vsyncadd %s282, %s287
          %s289 = smul.addr %s25, 6
          %s290 = smul.addr %s289, 128
          %s291 = scalar_lea.hbm %s0, %s290
          %s292 = sshll.u32 %s285, 4
          %s293 = int_to_ptr.vmem [resolvable:$true] %s292
          %298 = dma.hbm_to_vmem [thread:$0]  %s291, 768, %s293, %s282, 384, 384, 24
        $region36: #{dense_block_forward.5} parent=31 // pred_fallthru
          _
      $region32: #{dense_block_forward.5} parent=5 // pred_fallthru
        _
      %p299 = scmp.le.s32.totalorder 1, %s25
      %p300 = scmp.lt.s32.totalorder %s25, 3
      %p301 = pnand %p299, %p300
      %p302 = pneg %p301
      // Predicated region
      $region37: #{dense_block_forward.5} parent=5 // pred_check
        _
      $region38: #{dense_block_forward.5} parent=5 // pred_check_branch
        %304 = sbr.rel (%p301) target = $region40
      $region39: #{dense_block_forward.5} parent=5 // pred_region
        %s305 = ssub.s32 %s25, 1
        %s306 = sand.u32 %s38, 1
        %s307 = scalar_lea.sflag [#allocation3], %s306
        %s308 = sand.u32 %s38, 1
        %s309 = smul.addr %s308, 48
        %s310 = scalar_lea.vmem [#allocation2], %s309
        // Predicated region
        $region41: #{dense_block_forward.5} parent=39 // pred_check
          %p311 = pneg %p51
        $region42: #{dense_block_forward.5} parent=39 // pred_check_branch
          %313 = sbr.rel (%p311) target = $region44
        $region43: #{dense_block_forward.5} parent=39 // pred_region
          %314 = dma.done %s307, 768
        $region44: #{dense_block_forward.5} parent=39 // pred_fallthru
          _
        // Predicated region
        $region45: #{dense_block_forward.5} parent=39 // pred_check
          %p315 = pneg %p72
        $region46: #{dense_block_forward.5} parent=39 // pred_check_branch
          %317 = sbr.rel (%p315) target = $region48
        $region47: #{dense_block_forward.5} parent=39 // pred_region
          %318 = dma.done [#allocation6], 48
        $region48: #{dense_block_forward.5} parent=39 // pred_fallthru
          _
        // Predicated region
        $region49: #{dense_block_forward.5} parent=39 // pred_check
          %p319 = pneg %p93
        $region50: #{dense_block_forward.5} parent=39 // pred_check_branch
          %321 = sbr.rel (%p319) target = $region52
        $region51: #{dense_block_forward.5} parent=39 // pred_region
          %322 = dma.done [#allocation6], 48
        $region52: #{dense_block_forward.5} parent=39 // pred_fallthru
          _
        // Predicated region
        $region53: #{dense_block_forward.5} parent=39 // pred_check
          %p323 = pneg %p114
        $region54: #{dense_block_forward.5} parent=39 // pred_check_branch
          %325 = sbr.rel (%p323) target = $region56
        $region55: #{dense_block_forward.5} parent=39 // pred_region
          %326 = dma.done [#allocation9], 9216
        $region56: #{dense_block_forward.5} parent=39 // pred_fallthru
          _
        // Predicated region
        $region57: #{dense_block_forward.5} parent=39 // pred_check
          %p327 = pneg %p135
        $region58: #{dense_block_forward.5} parent=39 // pred_check_branch
          %329 = sbr.rel (%p327) target = $region60
        $region59: #{dense_block_forward.5} parent=39 // pred_region
          %330 = dma.done [#allocation9], 16
        $region60: #{dense_block_forward.5} parent=39 // pred_fallthru
          _
        %s331 = sand.u32 %s38, 1
        %s332 = scalar_lea.sflag [#allocation3], %s331
        %s333 = sand.u32 %s38, 1
        %s334 = smul.addr %s333, 48
        %s335 = scalar_lea.vmem [#allocation2], %s334
        %p336 = pneg %p51
        %p337 = pneg %p48
        %p338 = pneg %p72
        %p339 = pneg %p69
        %p340 = pneg %p93
        %p341 = pneg %p90
        %p342 = pneg %p114
        %p343 = pneg %p111
        %p344 = pneg %p135
        %p345 = pneg %p132
        %p346 = pneg %p161
        %p347 = pneg %p158
        %s348 = sand.u32 %s148, 1
        %s349 = scalar_lea.sflag [#allocation4], %s348
        %s350 = sand.u32 %s148, 1
        %s351 = smul.addr %s350, 8
        %s352 = scalar_lea.vmem [#allocation11], %s351
        %p353 = pneg %p187
        %p354 = pneg %p184
        %s355 = sand.u32 %s30, 1
        %s356 = scalar_lea.sflag [#allocation13], %s355
        %s357 = sand.u32 %s174, 1
        %s358 = scalar_lea.vmem [#allocation12], %s357
        %p359 = pneg %p213
        %p360 = pneg %p210
        %s361 = sand.u32 %s30, 1
        %s362 = scalar_lea.sflag [#allocation13], %s361
        %s363 = sand.u32 %s200, 1
        %s364 = scalar_lea.vmem [#allocation14], %s363
        %v365 = vld [vmem:[%s310] sm:$0xff]
        %v366 = vld [vmem:[%s310 + $0x8] sm:$0xff]
        %v367 = vld [vmem:[%s310 + $0x10] sm:$0xff]
        %v368 = vld [vmem:[%s310 + $0x18] sm:$0x1]
        %v369 = vld [vmem:[%s310 + $0x20] sm:$0x1]
        %v370 = vld [vmem:[%s310 + $0x28] sm:$0x1]
        %v371 = vld [vmem:[#allocation5] sm:$0x7]
        %v373 = vlaneseq
        %v374 = vshrl.u32 %v373, 7
        %v375 = vsub.s32 0, %v374
        %v376 = vrot.slane %v371, %v375
        %v377 = vlaneseq
        %v378 = vshrl.u32 %v377, 7
        %v379 = vsub.s32 1, %v378
        %v380 = vrot.slane %v371, %v379
        %v381 = vlaneseq
        %v382 = vshrl.u32 %v381, 7
        %v383 = vsub.s32 2, %v382
        %v384 = vrot.slane %v371, %v383
        %v388 = vmul.f32 %v365, %v376
        %v389 = vmul.f32 %v366, %v380
        %v390 = vmul.f32 %v367, %v384
        %v391 = vmul.f32 %v368, %v376
        %v392 = vmul.f32 %v369, %v380
        %v393 = vmul.f32 %v370, %v384
        %v394 = vld [vmem:[#allocation7] sm:$0x7]
        %v396 = vlaneseq
        %v397 = vshrl.u32 %v396, 7
        %v398 = vsub.s32 0, %v397
        %v399 = vrot.slane %v394, %v398
        %v400 = vlaneseq
        %v401 = vshrl.u32 %v400, 7
        %v402 = vsub.s32 1, %v401
        %v403 = vrot.slane %v394, %v402
        %v404 = vlaneseq
        %v405 = vshrl.u32 %v404, 7
        %v406 = vsub.s32 2, %v405
        %v407 = vrot.slane %v394, %v406
        %v411 = vadd.f32 %v388, %v399
        %v412 = vadd.f32 %v389, %v403
        %v413 = vadd.f32 %v390, %v407
        %v414 = vadd.f32 %v391, %v399
        %v415 = vadd.f32 %v392, %v403
        %v416 = vadd.f32 %v393, %v407
        %v417 = vmax.f32 %v411, 0.0
        %v418 = vmax.f32 %v412, 0.0
        %v419 = vmax.f32 %v413, 0.0
        %v420 = vmax.f32 %v414, 0.0
        %v421 = vmax.f32 %v415, 0.0
        %v422 = vmax.f32 %v416, 0.0
        %v423 = vlaneseq
        %v424 = vshrl.u32 %v423, 7
        %v425 = vadd.s32 %v424, 8
        %v426 = vlaneseq
        %v427 = vand.u32 %v426, 127
        %v428 = vadd.s32 %v427, 128
        %v429 = vadd.s32 %v427, 256
        %vm430 = vcmp.eq.s32.totalorder %v424, 0
        %vm431 = vcmp.eq.s32.totalorder %v425, 0
        %vm432 = vcmp.lt.s32.totalorder %v427, 144
        %vm433 = vcmp.lt.s32.totalorder %v428, 144
        %vm434 = vcmp.lt.s32.totalorder %v429, 144
        %vm435 = vmand %vm430, %vm432
        %vm436 = vmand %vm430, %vm433
        %vm437 = vmand %vm430, %vm434
        %vm438 = vmand %vm431, %vm432
        %vm439 = vmand %vm431, %vm433
        %vm440 = vmand %vm431, %vm434
        %vm441 = vcmp.eq.s32.totalorder %v424, 8
        %vm442 = vcmp.eq.s32.totalorder %v425, 8
        %vm443 = vcmp.ge.s32.totalorder %v427, 144
        %vm444 = vcmp.ge.s32.totalorder %v428, 144
        %vm445 = vcmp.ge.s32.totalorder %v429, 144
        %vm446 = vmand %vm441, %vm443
        %vm447 = vmand %vm441, %vm444
        %vm448 = vmand %vm441, %vm445
        %vm449 = vmand %vm442, %vm443
        %vm450 = vmand %vm442, %vm444
        %vm451 = vmand %vm442, %vm445
        %vm452 = vmor %vm435, %vm446
        %vm453 = vmor %vm436, %vm447
        %vm454 = vmor %vm437, %vm448
        %vm455 = vmor %vm438, %vm449
        %vm456 = vmor %vm439, %vm450
        %vm457 = vmor %vm440, %vm451
        %v458 = vsel %vm452, 0.0, %v417
        %v459 = vsel %vm453, 0.0, %v418
        %v460 = vsel %vm454, 0.0, %v419
        %v461 = vsel %vm455, 0.0, %v420
        %v462 = vsel %vm456, 0.0, %v421
        %v463 = vsel %vm457, 0.0, %v422
        %vm470 = vcmask 1046528
        %v471 = vrot.slane %v458, 1
        %v472 = vrot.slane %v461, 1
        %v473 = vsel %vm470, %v471, %v472
        %v474 = vrot.slane %v459, 1
        %v475 = vrot.slane %v462, 1
        %v476 = vsel %vm470, %v474, %v475
        %v477 = vrot.slane %v460, 1
        %v478 = vrot.slane %v463, 1
        %v479 = vsel %vm470, %v477, %v478
        %480 = vrot.lane.b32.xlu0 %v473, 32
        %v481 = vpop.permute.xlu0 %480
        %482 = vrot.lane.b32.xlu0 %v476, 32
        %v483 = vpop.permute.xlu0 %482
        %484 = vrot.lane.b32.xlu0 %v479, 32
        %v485 = vpop.permute.xlu0 %484
        %vm486 = vcmask 261120
        %v487 = vsel %vm486, %v481, %v483
        %v488 = vsel %vm486, %v483, %v485
        %v491 = vsel %vm486, %v460, %v481
        %v492 = vld [vmem:[#allocation8] sm:$0xff]
        %v493 = vld [vmem:[#allocation8 + $0x8] sm:$0xff]
        %v494 = vld [vmem:[#allocation8 + $0x10] sm:$0xff]
        %v495 = vld [vmem:[#allocation8 + $0x18] sm:$0xff]
        %v496 = vld [vmem:[#allocation8 + $0x20] sm:$0xff]
        %v497 = vld [vmem:[#allocation8 + $0x28] sm:$0xff]
        %v498 = vld [vmem:[#allocation8 + $0x30] sm:$0xff]
        %v499 = vld [vmem:[#allocation8 + $0x38] sm:$0xff]
        %v500 = vld [vmem:[#allocation8 + $0x40] sm:$0xff]
        %v501 = vld [vmem:[#allocation8 + $0x48] sm:$0xff]
        %v502 = vld [vmem:[#allocation8 + $0x50] sm:$0xff]
        %v503 = vld [vmem:[#allocation8 + $0x58] sm:$0xff]
        %v504 = vld [vmem:[#allocation8 + $0x60] sm:$0xff]
        %v505 = vld [vmem:[#allocation8 + $0x68] sm:$0xff]
        %v506 = vld [vmem:[#allocation8 + $0x70] sm:$0xff]
        %v507 = vld [vmem:[#allocation8 + $0x78] sm:$0xff]
        %v508 = vld [vmem:[#allocation8 + $0x80] sm:$0xff]
        %v509 = vld [vmem:[#allocation8 + $0x88] sm:$0xff]
        %v510 = vld [vmem:[#allocation8 + $0x90] sm:$0xff]
        %v511 = vld [vmem:[#allocation8 + $0x98] sm:$0xff]
        %v512 = vld [vmem:[#allocation8 + $0xa0] sm:$0xff]
        %v513 = vld [vmem:[#allocation8 + $0xa8] sm:$0xff]
        %v514 = vld [vmem:[#allocation8 + $0xb0] sm:$0xff]
        %v515 = vld [vmem:[#allocation8 + $0xb8] sm:$0xff]
        %v516 = vld [vmem:[#allocation8 + $0xc0] sm:$0xff]
        %v517 = vld [vmem:[#allocation8 + $0xc8] sm:$0xff]
        %v518 = vld [vmem:[#allocation8 + $0xd0] sm:$0xff]
        %v519 = vld [vmem:[#allocation8 + $0xd8] sm:$0xff]
        %v520 = vld [vmem:[#allocation8 + $0xe0] sm:$0xff]
        %v521 = vld [vmem:[#allocation8 + $0xe8] sm:$0xff]
        %v522 = vld [vmem:[#allocation8 + $0xf0] sm:$0xff]
        %v523 = vld [vmem:[#allocation8 + $0xf8] sm:$0xff]
        %v524 = vld [vmem:[#allocation8 + $0x100] sm:$0xff]
        %v525 = vld [vmem:[#allocation8 + $0x108] sm:$0xff]
        %v526 = vld [vmem:[#allocation8 + $0x110] sm:$0xff]
        %v527 = vld [vmem:[#allocation8 + $0x118] sm:$0xff]
        %v528 = vld [vmem:[#allocation8 + $0x120] sm:$0xff]
        %v529 = vld [vmem:[#allocation8 + $0x128] sm:$0xff]
        %v530 = vld [vmem:[#allocation8 + $0x130] sm:$0xff]
        %v531 = vld [vmem:[#allocation8 + $0x138] sm:$0xff]
        %v532 = vld [vmem:[#allocation8 + $0x140] sm:$0xff]
        %v533 = vld [vmem:[#allocation8 + $0x148] sm:$0xff]
        %v534 = vld [vmem:[#allocation8 + $0x150] sm:$0xff]
        %v535 = vld [vmem:[#allocation8 + $0x158] sm:$0xff]
        %v536 = vld [vmem:[#allocation8 + $0x160] sm:$0xff]
        %v537 = vld [vmem:[#allocation8 + $0x168] sm:$0xff]
        %v538 = vld [vmem:[#allocation8 + $0x170] sm:$0xff]
        %v539 = vld [vmem:[#allocation8 + $0x178] sm:$0xff]
        %v540 = vld [vmem:[#allocation8 + $0x180] sm:$0xff]
        %v541 = vld [vmem:[#allocation8 + $0x188] sm:$0xff]
        %v542 = vld [vmem:[#allocation8 + $0x190] sm:$0xff]
        %v543 = vld [vmem:[#allocation8 + $0x198] sm:$0xff]
        %v544 = vld [vmem:[#allocation8 + $0x1a0] sm:$0xff]
        %v545 = vld [vmem:[#allocation8 + $0x1a8] sm:$0xff]
        %v546 = vld [vmem:[#allocation8 + $0x1b0] sm:$0xff]
        %v547 = vld [vmem:[#allocation8 + $0x1b8] sm:$0xff]
        %v548 = vld [vmem:[#allocation8 + $0x1c0] sm:$0xff]
        %v549 = vld [vmem:[#allocation8 + $0x1c8] sm:$0xff]
        %v550 = vld [vmem:[#allocation8 + $0x1d0] sm:$0xff]
        %v551 = vld [vmem:[#allocation8 + $0x1d8] sm:$0xff]
        %v552 = vld [vmem:[#allocation8 + $0x1e0] sm:$0xff]
        %v553 = vld [vmem:[#allocation8 + $0x1e8] sm:$0xff]
        %v554 = vld [vmem:[#allocation8 + $0x1f0] sm:$0xff]
        %v555 = vld [vmem:[#allocation8 + $0x1f8] sm:$0xff]
        %v556 = vld [vmem:[#allocation8 + $0x200] sm:$0xff]
        %v557 = vld [vmem:[#allocation8 + $0x208] sm:$0xff]
        %v558 = vld [vmem:[#allocation8 + $0x210] sm:$0xff]
        %v559 = vld [vmem:[#allocation8 + $0x218] sm:$0xff]
        %v560 = vld [vmem:[#allocation8 + $0x220] sm:$0xff]
        %v561 = vld [vmem:[#allocation8 + $0x228] sm:$0xff]
        %v562 = vld [vmem:[#allocation8 + $0x230] sm:$0xff]
        %v563 = vld [vmem:[#allocation8 + $0x238] sm:$0xff]
        %v564 = vld [vmem:[#allocation10] sm:$0x1]
        %v566 = vlaneseq
        %v567 = vshrl.u32 %v566, 7
        %v568 = vsub.s32 0, %v567
        %v569 = vrot.slane %v564, %v568
        %vm571 = vcmask 523264
        %v572 = vsel %vm571, %v488, 0
        %574 = vmatprep.subr.mxu0 0.0
        %575 = vmatpush1.msra.mxu0 %v492
        %576 = vmatprep.subr.mxu0 0.0
        %577 = vmatpush1.msra.mxu0 %v493
        %578 = vmatprep.subr.mxu0 0.0
        %579 = vmatpush1.msra.mxu0 %v494
        %580 = vmatprep.subr.mxu0 0.0
        %581 = vmatpush1.msra.mxu0 %v495
        %582 = vmatprep.subr.mxu0 0.0
        %583 = vmatpush1.msra.mxu0 %v496
        %584 = vmatprep.subr.mxu0 0.0
        %585 = vmatpush1.msra.mxu0 %v497
        %586 = vmatprep.subr.mxu0 0.0
        %587 = vmatpush1.msra.mxu0 %v498
        %588 = vmatprep.subr.mxu0 0.0
        %589 = vmatpush1.msra.mxu0 %v499
        %590 = vmatprep.subr.mxu0 0.0
        %591 = vmatpush1.msra.mxu0 %v500
        %592 = vmatprep.subr.mxu0 0.0
        %593 = vmatpush1.msra.mxu0 %v501
        %594 = vmatprep.subr.mxu0 0.0
        %595 = vmatpush1.msra.mxu0 %v502
        %596 = vmatprep.subr.mxu0 0.0
        %597 = vmatpush1.msra.mxu0 %v503
        %598 = vmatprep.subr.mxu0 0.0
        %599 = vmatpush1.msra.mxu0 %v504
        %600 = vmatprep.subr.mxu0 0.0
        %601 = vmatpush1.msra.mxu0 %v505
        %602 = vmatprep.subr.mxu0 0.0
        %603 = vmatpush1.msra.mxu0 %v506
        %604 = vmatprep.subr.mxu0 0.0
        %605 = vmatpush1.msra.mxu0 %v507
        %606 = vmatprep.subr.mxu0 0.0
        %607 = vmatpush1.msra.mxu0 %v508
        %608 = vmatprep.subr.mxu0 0.0
        %609 = vmatpush1.msra.mxu0 %v509
        %610 = vmatprep.subr.mxu0 0.0
        %611 = vmatpush1.msra.mxu0 %v510
        %612 = vmatprep.subr.mxu0 0.0
        %613 = vmatpush1.msra.mxu0 %v511
        %614 = vmatprep.subr.mxu0 0.0
        %615 = vmatpush1.msra.mxu0 %v512
        %616 = vmatprep.subr.mxu0 0.0
        %617 = vmatpush1.msra.mxu0 %v513
        %618 = vmatprep.subr.mxu0 0.0
        %619 = vmatpush1.msra.mxu0 %v514
        %620 = vmatprep.subr.mxu0 0.0
        %621 = vmatpush1.msra.mxu0 %v515
        %622 = vmatprep.subr.mxu0 0.0
        %623 = vmatpush1.msra.mxu0 %v516
        %624 = vmatprep.subr.mxu0 0.0
        %625 = vmatpush1.msra.mxu0 %v517
        %626 = vmatprep.subr.mxu0 0.0
        %627 = vmatpush1.msra.mxu0 %v518
        %628 = vmatprep.subr.mxu0 0.0
        %629 = vmatpush1.msra.mxu0 %v519
        %630 = vmatprep.subr.mxu0 0.0
        %631 = vmatpush1.msra.mxu0 %v520
        %632 = vmatprep.subr.mxu0 0.0
        %633 = vmatpush1.msra.mxu0 %v521
        %634 = vmatprep.subr.mxu0 0.0
        %635 = vmatpush1.msra.mxu0 %v522
        %636 = vmatprep.subr.mxu0 0.0
        %637 = vmatpush1.msra.mxu0 %v523
        %638 = vmatprep.mubr.f32.mxu0 %v459
        %639 = vmatmul.mubr.f32.gmra.mrb[0].mxu0 %v458
        %v640 = vpop.f32.mrb[0].mxu0
        %v641 = vadd.f32 %v569, %v640
        %v642 = vpop.f32.mrb[0].mxu0
        %643 = vdwg.mxu0
        %644 = vmatprep.subr.mxu0 0.0
        %645 = vmatpush1.msra.mxu0 %v524
        %646 = vmatprep.subr.mxu0 0.0
        %647 = vmatpush1.msra.mxu0 %v525
        %648 = vmatprep.subr.mxu0 0.0
        %649 = vmatpush1.msra.mxu0 %v526
        %650 = vmatprep.subr.mxu0 0.0
        %651 = vmatpush1.msra.mxu0 %v527
        %652 = vmatprep.subr.mxu0 0.0
        %653 = vmatpush1.msra.mxu0 %v528
        %654 = vmatprep.subr.mxu0 0.0
        %655 = vmatpush1.msra.mxu0 %v529
        %656 = vmatprep.subr.mxu0 0.0
        %657 = vmatpush1.msra.mxu0 %v530
        %658 = vmatprep.subr.mxu0 0.0
        %659 = vmatpush1.msra.mxu0 %v531
        %660 = vmatprep.subr.mxu0 0.0
        %661 = vmatpush1.msra.mxu0 %v532
        %662 = vmatprep.subr.mxu0 0.0
        %663 = vmatpush1.msra.mxu0 %v533
        %664 = vmatprep.subr.mxu0 0.0
        %665 = vmatpush1.msra.mxu0 %v534
        %666 = vmatprep.subr.mxu0 0.0
        %667 = vmatpush1.msra.mxu0 %v535
        %668 = vmatprep.subr.mxu0 0.0
        %669 = vmatpush1.msra.mxu0 %v536
        %670 = vmatprep.subr.mxu0 0.0
        %671 = vmatpush1.msra.mxu0 %v537
        %672 = vmatprep.subr.mxu0 0.0
        %673 = vmatpush1.msra.mxu0 %v538
        %674 = vmatprep.subr.mxu0 0.0
        %675 = vmatpush1.msra.mxu0 %v539
        %676 = vmatprep.subr.mxu0 0.0
        %677 = vmatpush1.msra.mxu0 %v540
        %678 = vmatprep.subr.mxu0 0.0
        %679 = vmatpush1.msra.mxu0 %v541
        %680 = vmatprep.subr.mxu0 0.0
        %681 = vmatpush1.msra.mxu0 %v542
        %682 = vmatprep.subr.mxu0 0.0
        %683 = vmatpush1.msra.mxu0 %v543
        %684 = vmatprep.subr.mxu0 0.0
        %685 = vmatpush1.msra.mxu0 %v544
        %686 = vmatprep.subr.mxu0 0.0
        %687 = vmatpush1.msra.mxu0 %v545
        %688 = vmatprep.subr.mxu0 0.0
        %689 = vmatpush1.msra.mxu0 %v546
        %690 = vmatprep.subr.mxu0 0.0
        %691 = vmatpush1.msra.mxu0 %v547
        %692 = vmatprep.subr.mxu0 0.0
        %693 = vmatpush1.msra.mxu0 %v548
        %694 = vmatprep.subr.mxu0 0.0
        %695 = vmatpush1.msra.mxu0 %v549
        %696 = vmatprep.subr.mxu0 0.0
        %697 = vmatpush1.msra.mxu0 %v550
        %698 = vmatprep.subr.mxu0 0.0
        %699 = vmatpush1.msra.mxu0 %v551
        %700 = vmatprep.subr.mxu0 0.0
        %701 = vmatpush1.msra.mxu0 %v552
        %702 = vmatprep.subr.mxu0 0.0
        %703 = vmatpush1.msra.mxu0 %v553
        %704 = vmatprep.subr.mxu0 0.0
        %705 = vmatpush1.msra.mxu0 %v554
        %706 = vmatprep.subr.mxu0 0.0
        %707 = vmatpush1.msra.mxu0 %v555
        %708 = vmatprep.mubr.f32.mxu0 %v487
        %709 = vmatmul.mubr.f32.gmra.mrb[0].mxu0 %v491
        %v710 = vpop.f32.mrb[0].mxu0
        %v711 = vadd.f32 %v641, %v710
        %v712 = vpop.f32.mrb[0].mxu0
        %713 = vdwg.mxu0
        %714 = vmatprep.subr.mxu0 0.0
        %715 = vmatpush1.msra.mxu0 %v556
        %716 = vmatprep.subr.mxu0 0.0
        %717 = vmatpush1.msra.mxu0 %v557
        %718 = vmatprep.subr.mxu0 0.0
        %719 = vmatpush1.msra.mxu0 %v558
        %720 = vmatprep.subr.mxu0 0.0
        %721 = vmatpush1.msra.mxu0 %v559
        %722 = vmatprep.subr.mxu0 0.0
        %723 = vmatpush1.msra.mxu0 %v560
        %724 = vmatprep.subr.mxu0 0.0
        %725 = vmatpush1.msra.mxu0 %v561
        %726 = vmatprep.subr.mxu0 0.0
        %727 = vmatpush1.msra.mxu0 %v562
        %728 = vmatprep.subr.mxu0 0.0
        %729 = vmatpush1.msra.mxu0 %v563
        %730 = vmatprep.subr.mxu0 0.0
        %731 = vmatpush1.msra.mxu0 0.0
        %732 = vmatprep.subr.mxu0 0.0
        %733 = vmatpush1.msra.mxu0 0.0
        %734 = vmatprep.subr.mxu0 0.0
        %735 = vmatpush1.msra.mxu0 0.0
        %736 = vmatprep.subr.mxu0 0.0
        %737 = vmatpush1.msra.mxu0 0.0
        %738 = vmatprep.subr.mxu0 0.0
        %739 = vmatpush1.msra.mxu0 0.0
        %740 = vmatprep.subr.mxu0 0.0
        %741 = vmatpush1.msra.mxu0 0.0
        %742 = vmatprep.subr.mxu0 0.0
        %743 = vmatpush1.msra.mxu0 0.0
        %744 = vmatprep.subr.mxu0 0.0
        %745 = vmatpush1.msra.mxu0 0.0
        %746 = vmatprep.subr.mxu0 0.0
        %747 = vmatpush1.msra.mxu0 0.0
        %748 = vmatprep.subr.mxu0 0.0
        %749 = vmatpush1.msra.mxu0 0.0
        %750 = vmatprep.subr.mxu0 0.0
        %751 = vmatpush1.msra.mxu0 0.0
        %752 = vmatprep.subr.mxu0 0.0
        %753 = vmatpush1.msra.mxu0 0.0
        %754 = vmatprep.subr.mxu0 0.0
        %755 = vmatpush1.msra.mxu0 0.0
        %756 = vmatprep.subr.mxu0 0.0
        %757 = vmatpush1.msra.mxu0 0.0
        %758 = vmatprep.subr.mxu0 0.0
        %759 = vmatpush1.msra.mxu0 0.0
        %760 = vmatprep.subr.mxu0 0.0
        %761 = vmatpush1.msra.mxu0 0.0
        %762 = vmatprep.subr.mxu0 0.0
        %763 = vmatpush1.msra.mxu0 0.0
        %764 = vmatprep.subr.mxu0 0.0
        %765 = vmatpush1.msra.mxu0 0.0
        %766 = vmatprep.subr.mxu0 0.0
        %767 = vmatpush1.msra.mxu0 0.0
        %768 = vmatprep.subr.mxu0 0.0
        %769 = vmatpush1.msra.mxu0 0.0
        %770 = vmatprep.subr.mxu0 0.0
        %771 = vmatpush1.msra.mxu0 0.0
        %772 = vmatprep.subr.mxu0 0.0
        %773 = vmatpush1.msra.mxu0 0.0
        %774 = vmatprep.subr.mxu0 0.0
        %775 = vmatpush1.msra.mxu0 0.0
        %776 = vmatprep.subr.mxu0 0.0
        %777 = vmatpush1.msra.mxu0 0.0
        %778 = vmatprep.mubr.f32.mxu0 0.0
        %779 = vmatmul.mubr.f32.gmra.mrb[0].mxu0 %v572
        %v780 = vpop.f32.mrb[0].mxu0
        %v781 = vadd.f32 %v711, %v780
        %v782 = vpop.f32.mrb[0].mxu0
        %783 = vdwg.mxu0
        %784 = vst [vmem:[%s352] sm:$0xff] %v781
        %v785 = vrot.slane %v781, 4
        %v786 = vadd.f32 %v781, %v785
        %v787 = vrot.slane %v786, 2
        %v788 = vadd.f32 %v786, %v787
        %v789 = vrot.slane %v788, 1
        %v790 = vadd.f32 %v788, %v789
        %791 = vst [vmem:[%s358] sm:$0x1] %v790
        %v792 = vmul.f32 %v781, %v781
        %v793 = vrot.slane %v792, 4
        %v794 = vadd.f32 %v792, %v793
        %v795 = vrot.slane %v794, 2
        %v796 = vadd.f32 %v794, %v795
        %v797 = vrot.slane %v796, 1
        %v798 = vadd.f32 %v796, %v797
        %799 = vst [vmem:[%s364] sm:$0x1] %v798
        %s800 = sand.u32 %s148, 1
        %s801 = scalar_lea.sflag [#allocation4], %s800
        %s802 = sand.u32 %s148, 1
        %s803 = smul.addr %s802, 8
        %s804 = scalar_lea.vmem [#allocation11], %s803
        %s805 = sand.u32 %s30, 1
        %s806 = scalar_lea.sflag [#allocation13], %s805
        %s807 = sand.u32 %s174, 1
        %s808 = scalar_lea.vmem [#allocation12], %s807
        %s809 = sand.u32 %s30, 1
        %s810 = scalar_lea.sflag [#allocation13], %s809
        %s811 = sand.u32 %s200, 1
        %s812 = scalar_lea.vmem [#allocation14], %s811
        // Predicated region
        $region61: #{dense_block_forward.5} parent=39 // pred_check
          %p813 = pneg %p158
        $region62: #{dense_block_forward.5} parent=39 // pred_check_branch
          %815 = sbr.rel (%p813) target = $region64
        $region63: #{dense_block_forward.5} parent=39 // pred_region
          %s817 = ssub.s32 128, 128
          %818 = vsyncadd %s801, %s817
          %s819 = smul.addr %s30, 128
          %s820 = scalar_lea.hbm %s5, %s819
          %s822 = sshll.u32 %s804, 4
          %s823 = int_to_ptr.vmem [resolvable:$true] %s822
          %825 = dma.vmem_to_hbm [thread:$0]  %s823, 128, %s820, %s801
        $region64: #{dense_block_forward.5} parent=39 // pred_fallthru
          _
        // Predicated region
        $region65: #{dense_block_forward.5} parent=39 // pred_check
          %p826 = pneg %p184
        $region66: #{dense_block_forward.5} parent=39 // pred_check_branch
          %828 = sbr.rel (%p826) target = $region68
        $region67: #{dense_block_forward.5} parent=39 // pred_region
          %s830 = ssub.s32 16, 16
          %831 = vsyncadd %s806, %s830
          %s832 = smul.addr %s30, 16
          %s833 = scalar_lea.hbm %s6, %s832
          %s835 = sshll.u32 %s808, 4
          %s836 = int_to_ptr.vmem [resolvable:$true] %s835
          %838 = dma.vmem_to_hbm [thread:$0]  %s836, 16, %s833, %s806
        $region68: #{dense_block_forward.5} parent=39 // pred_fallthru
          _
        // Predicated region
        $region69: #{dense_block_forward.5} parent=39 // pred_check
          %p839 = pneg %p210
        $region70: #{dense_block_forward.5} parent=39 // pred_check_branch
          %841 = sbr.rel (%p839) target = $region72
        $region71: #{dense_block_forward.5} parent=39 // pred_region
          %s843 = ssub.s32 16, 16
          %844 = vsyncadd %s810, %s843
          %s845 = smul.addr %s30, 16
          %s846 = scalar_lea.hbm %s7, %s845
          %s848 = sshll.u32 %s812, 4
          %s849 = int_to_ptr.vmem [resolvable:$true] %s848
          %851 = dma.vmem_to_hbm [thread:$0]  %s849, 16, %s846, %s810
        $region72: #{dense_block_forward.5} parent=39 // pred_fallthru
          _
      $region40: #{dense_block_forward.5} parent=5 // pred_fallthru
        _
      %p852 = scmp.le.s32.totalorder 2, %s25
      // Predicated region
      $region73: #{dense_block_forward.5} parent=5 // pred_check
        %p853 = pneg %p852
      $region74: #{dense_block_forward.5} parent=5 // pred_check_branch
        %855 = sbr.rel (%p853) target = $region76
      $region75: #{dense_block_forward.5} parent=5 // pred_region
        %s856 = ssub.s32 %s25, 2
        // Predicated region
        $region77: #{dense_block_forward.5} parent=75 // pred_check
          %p857 = pneg %p164
        $region78: #{dense_block_forward.5} parent=75 // pred_check_branch
          %859 = sbr.rel (%p857) target = $region80
        $region79: #{dense_block_forward.5} parent=75 // pred_region
          %s860 = sand.u32 %s149, 1
          %s861 = scalar_lea.sflag [#allocation4], %s860
          %s862 = sand.u32 %s149, 1
          %s863 = smul.addr %s862, 8
          %s864 = scalar_lea.vmem [#allocation11], %s863
          %865 = dma.done %s861, 128
        $region80: #{dense_block_forward.5} parent=75 // pred_fallthru
          _
        // Predicated region
        $region81: #{dense_block_forward.5} parent=75 // pred_check
          %p866 = pneg %p190
        $region82: #{dense_block_forward.5} parent=75 // pred_check_branch
          %868 = sbr.rel (%p866) target = $region84
        $region83: #{dense_block_forward.5} parent=75 // pred_region
          %s869 = sand.u32 %s31, 1
          %s870 = scalar_lea.sflag [#allocation13], %s869
          %s871 = sand.u32 %s175, 1
          %s872 = scalar_lea.vmem [#allocation12], %s871
          %873 = dma.done %s870, 16
        $region84: #{dense_block_forward.5} parent=75 // pred_fallthru
          _
        // Predicated region
        $region85: #{dense_block_forward.5} parent=75 // pred_check
          %p874 = pneg %p216
        $region86: #{dense_block_forward.5} parent=75 // pred_check_branch
          %876 = sbr.rel (%p874) target = $region88
        $region87: #{dense_block_forward.5} parent=75 // pred_region
          %s877 = sand.u32 %s31, 1
          %s878 = scalar_lea.sflag [#allocation13], %s877
          %s879 = sand.u32 %s201, 1
          %s880 = scalar_lea.vmem [#allocation14], %s879
          %881 = dma.done %s878, 16
        $region88: #{dense_block_forward.5} parent=75 // pred_fallthru
          _
      $region76: #{dense_block_forward.5} parent=5 // pred_fallthru
        _
    $region6: #{dense_block_forward.5} parent=1 // loop_footer
      %s29 = sadd.s32 1, %s25
    $region7: #{dense_block_forward.5} parent=1 // loop_footer_branch
      %24 = sbr.rel target = $region3
    $region8: #{dense_block_forward.5} parent=1 // loop_exit
      _
    %882 = vsyncpa [#allocation3], 1
    %s883 = scalar_lea.sflag [#allocation3], 1
    %884 = vsyncpa %s883, 1
    %885 = vsyncpa [#allocation6], 1
    %886 = vsyncpa [#allocation9], 1
    %887 = vsyncpa [#allocation4], 1
    %s888 = scalar_lea.sflag [#allocation4], 1
    %889 = vsyncpa %s888, 1
    %890 = vsyncpa [#allocation13], 1
    %s891 = scalar_lea.sflag [#allocation13], 1
    %892 = vsyncpa %s891, 1

</llo_original>
